<compile_context>
chip_gen: v6e
topology: v6e:2x2x1
jax: 0.10.0
libtpu: 0.0.40
codegen_flags: <defaults>
</compile_context>

<pallas_src>
import functools

import jax
import jax.numpy as jnp
from jax import lax
from jax.experimental import pallas as pl
from jax.experimental.pallas import tpu as pltpu


def _round_up(x, m):
    return ((x + m - 1) // m) * m


def _supcon_kernel(q_ref, kt_ref, rlab_ref, clab_ref, loss_ref,
                   m_sc, l_sc, psum_sc, pcnt_sc,
                   *, inv_temp, loss_scale, n_valid, block_q, block_k):
    qi = pl.program_id(0)
    ki = pl.program_id(1)

    @pl.when(ki == 0)
    def _init():
        m_sc[...] = jnp.full((block_q, 1), -jnp.inf, jnp.float32)
        l_sc[...] = jnp.zeros((block_q, 1), jnp.float32)
        psum_sc[...] = jnp.zeros((block_q, 1), jnp.float32)
        pcnt_sc[...] = jnp.zeros((block_q, 1), jnp.float32)

    # Canonical (TQ, D) x (D, TK) matmul on pre-transposed contrast features:
    # bf16 (or f32) operands, f32 MXU accumulation, no in-kernel transpose.
    s = jnp.dot(q_ref[...], kt_ref[...],
                preferred_element_type=jnp.float32) * inv_temp

    # Cheap masks: 1-D iotas broadcast-compared (no full-tile int32 iota);
    # column validity comes straight from the labels (padding sentinel = -1).
    row_ids = qi * block_q + lax.broadcasted_iota(jnp.int32, (block_q, 1), 0)
    col_ids = ki * block_k + lax.broadcasted_iota(jnp.int32, (1, block_k), 1)
    rlab = rlab_ref[...]                         # (TQ, 1) int32
    clab = clab_ref[...]                         # (1, TK) int32
    keep = (clab >= 0) & (row_ids != col_ids)    # (TQ, TK) denominator mask
    pos = ((rlab == clab) & keep).astype(jnp.float32)

    # Single fused -1e30 bias (NOT -inf: keeps 0*bias finite and exp underflow
    # exact).  Since pos == 0 wherever the bias applies, pos*s_b == pos*s.
    s_b = jnp.where(keep, s, -1e30)

    m_prev = m_sc[...]
    m_new = jnp.maximum(m_prev, jnp.max(s_b, axis=1, keepdims=True))
    alpha = jnp.exp(m_prev - m_new)
    p = jnp.exp(s_b - m_new)                     # excluded entries underflow to 0

    l_sc[...] = alpha * l_sc[...] + jnp.sum(p, axis=1, keepdims=True)
    m_sc[...] = m_new
    psum_sc[...] += jnp.sum(pos * s_b, axis=1, keepdims=True)
    pcnt_sc[...] += jnp.sum(pos, axis=1, keepdims=True)

    @pl.when(ki == pl.num_programs(1) - 1)
    def _finalize():
        log_z = m_sc[...] + jnp.log(l_sc[...])
        pcnt = pcnt_sc[...]
        # Guard anchors with no positives (and padded rows) against 0-division.
        mean_log_prob_pos = psum_sc[...] / jnp.maximum(pcnt, 1.0) - log_z
        row_idx = qi * block_q + lax.broadcasted_iota(
            jnp.int32, (block_q, 1), 0)
        valid = (row_idx < n_valid) & (pcnt > 0.0)
        loss_ref[...] = jnp.where(valid, -loss_scale * mean_log_prob_pos,
                                  jnp.zeros_like(mean_log_prob_pos))


def supcon_loss(features, labels=None, mask=None, *,
                temperature=0.07, contrast_mode='all', base_temperature=0.07,
                block_q=256, block_k=512, compute_dtype=jnp.bfloat16):
    """Pallas implementation of SupConLoss.forward (contrast_mode='all').

    features: [bsz, n_views, ...] (flattened to [bsz, n_views, D])
    labels:   [bsz] int or None (None + mask=None -> SimCLR)
    """
    if features.ndim < 3:
        raise ValueError('`features` needs to be [bsz, n_views, ...]')
    if features.ndim > 3:
        features = features.reshape(features.shape[0], features.shape[1], -1)
    if contrast_mode != 'all':
        # TODO(synk): contrast_mode='one' (anchor = view 0 only) not wired up.
        raise ValueError('only contrast_mode="all" implemented')
    if labels is not None and mask is not None:
        raise ValueError('Cannot define both `labels` and `mask`')
    if mask is not None:
        # TODO(synk): arbitrary bsz x bsz masks need a blocked (TQ,TK) mask input.
        raise NotImplementedError('explicit `mask` path not implemented')

    bsz, n_views, d = features.shape
    if labels is None:
        group = jnp.arange(bsz, dtype=jnp.int32)     # SimCLR: eye(bsz) positives
    else:
        labels = jnp.asarray(labels).reshape(-1)
        if labels.shape[0] != bsz:
            raise ValueError('Num of labels does not match num of features')
        group = labels.astype(jnp.int32)
    # Shift labels to be >= 0 so -1 can safely mark padded columns.
    group = group - jnp.min(group)

    n = bsz * n_views
    # Loss is invariant to anchor ordering -> sample-major stacking (plain
    # reshape, no HBM shuffle of the feature rows).
    cf = features.reshape(n, d).astype(compute_dtype)
    anchor_group = jnp.repeat(group, n_views)

    # Tile sizing: round to 128, clamp to the (128-rounded) problem size and
    # force block_k to be a multiple of block_q (padding = round_up(n, block_k)).
    block_q = _round_up(max(int(block_q), 128), 128)
    block_k = _round_up(max(int(block_k), 128), 128)
    n128 = _round_up(n, 128)
    block_k = max(128, min(block_k, n128))
    block_q = max(128, min(block_q, block_k))
    block_k = (block_k // block_q) * block_q
    n_pad = _round_up(n, block_k)
    d_pad = _round_up(max(d, 128), 128)

    feat_p = jnp.pad(cf, ((0, n_pad - n), (0, d_pad - d)))      # (n_pad, d_pad)
    feat_t = feat_p.T                                           # (d_pad, n_pad)
    lab_p = jnp.pad(anchor_group, (0, n_pad - n), constant_values=-1)
    row_lab = lab_p.reshape(n_pad, 1)
    col_lab = lab_p.reshape(1, n_pad)

    kernel = functools.partial(
        _supcon_kernel,
        inv_temp=float(1.0 / temperature),
        loss_scale=float(temperature / base_temperature),
        n_valid=n, block_q=block_q, block_k=block_k)

    num_q = n_pad // block_q
    num_k = n_pad // block_k

    # VMEM budget estimate (double-buffered feature tiles + f32 temporaries),
    # clamped between the scoped defaults and the v7x physical 64 MiB.
    itemsize = jnp.dtype(compute_dtype).itemsize
    vmem_est = (2 * block_q * d_pad * itemsize        # Q blocks (double-buffered)
                + 2 * d_pad * block_k * itemsize      # K^T blocks (double-buffered)
                + 8 * block_q * block_k * 4           # full-tile f32 temporaries
                + 2 * (block_q + block_k) * 128 * 4)  # label blocks (lane-padded)
    vmem_limit = int(min(max(2 * vmem_est, 32 * 1024 * 1024), 64 * 1024 * 1024))

    per_row_loss = pl.pallas_call(
        kernel,
        out_shape=jax.ShapeDtypeStruct((n_pad, 1), jnp.float32),
        grid_spec=pltpu.PrefetchScalarGridSpec(
            num_scalar_prefetch=0,
            grid=(num_q, num_k),
            in_specs=[
                pl.BlockSpec((block_q, d_pad), lambda qi, ki: (qi, 0)),   # anchors
                pl.BlockSpec((d_pad, block_k), lambda qi, ki: (0, ki)),   # contrasts^T
                pl.BlockSpec((block_q, 1), lambda qi, ki: (qi, 0)),       # row labels
                pl.BlockSpec((1, block_k), lambda qi, ki: (0, ki)),       # col labels
            ],
            out_specs=pl.BlockSpec((block_q, 1), lambda qi, ki: (qi, 0)),
            scratch_shapes=[pltpu.VMEM((block_q, 1), jnp.float32)] * 4,
        ),
        compiler_params=pltpu.CompilerParams(
            dimension_semantics=("parallel", "arbitrary"),
            vmem_limit_bytes=vmem_limit),
    )(feat_p, feat_t, row_lab, col_lab)

    # loss.view(anchor_count, batch_size).mean() == mean over all N anchors.
    return jnp.sum(per_row_loss) / jnp.float32(n)


def _supcon_loss_ref(features, labels, temperature=0.07, base_temperature=0.07,
                     matmul_dtype=jnp.float32):
    """Pure-JAX reference mirroring the PyTorch code (contrast_mode='all')."""
    bsz, n_views, d = features.shape
    n = bsz * n_views
    labels = labels.reshape(-1)
    base_mask = (labels[:, None] == labels[None, :]).astype(jnp.float32)
    cf = jnp.transpose(features, (1, 0, 2)).reshape(n, d)
    cf_m = cf.astype(matmul_dtype)
    adc = jnp.dot(cf_m, cf_m.T, preferred_element_type=jnp.float32) / temperature
    logits = adc - jnp.max(adc, axis=1, keepdims=True)
    full_mask = jnp.tile(base_mask, (n_views, n_views))
    logits_mask = 1.0 - jnp.eye(n, dtype=jnp.float32)
    full_mask = full_mask * logits_mask
    exp_logits = jnp.exp(logits) * logits_mask
    log_prob = logits - jnp.log(jnp.sum(exp_logits, axis=1, keepdims=True))
    mean_log_prob_pos = (jnp.sum(full_mask * log_prob, axis=1)
                         / jnp.sum(full_mask, axis=1))
    loss = -(temperature / base_temperature) * mean_log_prob_pos
    return jnp.mean(loss)


if __name__ == "__main__":
    key = jax.random.PRNGKey(0)
    k_feat, k_lab, k_feat2, k_lab2 = jax.random.split(key, 4)

    # --- small config (single tile) ------------------------------------------
    bsz, n_views, feat_dim = 8, 2, 32
    feats = jax.random.normal(k_feat, (bsz, n_views, feat_dim), dtype=jnp.float32)
    feats = feats / jnp.linalg.norm(feats, axis=-1, keepdims=True)
    labels = jax.random.randint(k_lab, (bsz,), 0, 3)

    loss = jax.block_until_ready(supcon_loss(feats, labels=labels))
    ref_bf16 = _supcon_loss_ref(feats, labels, matmul_dtype=jnp.bfloat16)
    ref_f32 = _supcon_loss_ref(feats, labels, matmul_dtype=jnp.float32)
    assert jnp.allclose(loss, ref_bf16, rtol=2e-3, atol=2e-3), (loss, ref_bf16)
    assert jnp.allclose(loss, ref_f32, rtol=5e-2, atol=1e-1), (loss, ref_f32)

    # --- forced small tiles: grid (2,2) exercises the online accumulation ----
    bsz2, n_views2, feat_dim2 = 96, 2, 48
    feats2 = jax.random.normal(k_feat2, (bsz2, n_views2, feat_dim2),
                               dtype=jnp.float32)
    feats2 = feats2 / jnp.linalg.norm(feats2, axis=-1, keepdims=True)
    labels2 = jax.random.randint(k_lab2, (bsz2,), 0, 10)

    loss2 = jax.block_until_ready(
        supcon_loss(feats2, labels=labels2, block_q=128, block_k=128))
    ref2_bf16 = _supcon_loss_ref(feats2, labels2, matmul_dtype=jnp.bfloat16)
    ref2_f32 = _supcon_loss_ref(feats2, labels2, matmul_dtype=jnp.float32)
    assert jnp.allclose(loss2, ref2_bf16, rtol=2e-3, atol=2e-3), (loss2, ref2_bf16)
    assert jnp.allclose(loss2, ref2_f32, rtol=5e-2, atol=1e-1), (loss2, ref2_f32)

    # --- same data through the default (large-tile) path ---------------------
    loss2b = jax.block_until_ready(supcon_loss(feats2, labels=labels2))
    assert jnp.allclose(loss2b, ref2_bf16, rtol=2e-3, atol=2e-3), (loss2b, ref2_bf16)

    # --- negative labels: exercises the >=0 remap vs the -1 padding sentinel -
    labels_neg = labels2 - 5
    loss_neg = jax.block_until_ready(
        supcon_loss(feats2, labels=labels_neg, block_q=128, block_k=128))
    assert jnp.allclose(loss_neg, ref2_bf16, rtol=2e-3, atol=2e-3), (loss_neg, ref2_bf16)

    # --- SimCLR path (labels=None, mask=None) ---------------------------------
    loss3 = jax.block_until_ready(supcon_loss(feats))
    ref3 = _supcon_loss_ref(feats, jnp.arange(bsz), matmul_dtype=jnp.bfloat16)
    assert jnp.allclose(loss3, ref3, rtol=2e-3, atol=2e-3), (loss3, ref3)

    print("KERNEL_OK")
</pallas_src>

<mosaic_0001>
module attributes {stable_mosaic.version = 11 : i64} {
  func.func @_supcon_kernel(%arg0: i32, %arg1: i32, %arg2: memref<128x128xbf16, #tpu.memory_space<vmem>>, %arg3: memref<128x128xbf16, #tpu.memory_space<vmem>>, %arg4: memref<128x1xi32, #tpu.memory_space<vmem>>, %arg5: memref<1x128xi32, #tpu.memory_space<vmem>>, %arg6: memref<128x1xf32, #tpu.memory_space<vmem>>, %arg7: memref<128x1xf32, #tpu.memory_space<vmem>>, %arg8: memref<128x1xf32, #tpu.memory_space<vmem>>, %arg9: memref<128x1xf32, #tpu.memory_space<vmem>>, %arg10: memref<128x1xf32, #tpu.memory_space<vmem>>) attributes {dimension_semantics = [#tpu.dimension_semantics<parallel>, #tpu.dimension_semantics<arbitrary>], iteration_bounds = array<i64: 1, 1>, scalar_prefetch = 0 : i64, scratch_operands = 4 : i64, tpu.core_type = #tpu.core_type<tc>, window_params = [{transform_indices = @transform_0, window_bounds = array<i64: 128, 128>}, {transform_indices = @transform_1, window_bounds = array<i64: 128, 128>}, {transform_indices = @transform_2, window_bounds = array<i64: 128, 1>}, {transform_indices = @transform_3, window_bounds = array<i64: 1, 128>}, {transform_indices = @transform_4, window_bounds = array<i64: 128, 1>}]} {
    %c0_i32 = arith.constant 0 : i32
    %0 = arith.cmpi eq, %arg1, %c0_i32 : i32
    %1 = arith.extui %0 : i1 to i32
    %c0_i32_0 = arith.constant 0 : i32
    %2 = arith.cmpi ne, %1, %c0_i32_0 : i32
    scf.if %2 {
      %cst_34 = arith.constant 0xFF800000 : f32
      %63 = vector.broadcast %cst_34 : f32 to vector<128x1xf32>
      %c0_35 = arith.constant 0 : index
      %c0_36 = arith.constant 0 : index
      %64 = vector.load %arg7[%c0_35, %c0_36] : memref<128x1xf32, #tpu.memory_space<vmem>>, vector<128x1xf32>
      tpu.vector_store %arg7[%c0_35, %c0_36], %63 {strides = array<i32>} : memref<128x1xf32, #tpu.memory_space<vmem>>, vector<128x1xf32>,
      %cst_37 = arith.constant 0.000000e+00 : f32
      %65 = vector.broadcast %cst_37 : f32 to vector<128x1xf32>
      %c0_38 = arith.constant 0 : index
      %c0_39 = arith.constant 0 : index
      %66 = vector.load %arg8[%c0_38, %c0_39] : memref<128x1xf32, #tpu.memory_space<vmem>>, vector<128x1xf32>
      tpu.vector_store %arg8[%c0_38, %c0_39], %65 {strides = array<i32>} : memref<128x1xf32, #tpu.memory_space<vmem>>, vector<128x1xf32>,
      %cst_40 = arith.constant 0.000000e+00 : f32
      %67 = vector.broadcast %cst_40 : f32 to vector<128x1xf32>
      %c0_41 = arith.constant 0 : index
      %c0_42 = arith.constant 0 : index
      %68 = vector.load %arg9[%c0_41, %c0_42] : memref<128x1xf32, #tpu.memory_space<vmem>>, vector<128x1xf32>
      tpu.vector_store %arg9[%c0_41, %c0_42], %67 {strides = array<i32>} : memref<128x1xf32, #tpu.memory_space<vmem>>, vector<128x1xf32>,
      %cst_43 = arith.constant 0.000000e+00 : f32
      %69 = vector.broadcast %cst_43 : f32 to vector<128x1xf32>
      %c0_44 = arith.constant 0 : index
      %c0_45 = arith.constant 0 : index
      %70 = vector.load %arg10[%c0_44, %c0_45] : memref<128x1xf32, #tpu.memory_space<vmem>>, vector<128x1xf32>
      tpu.vector_store %arg10[%c0_44, %c0_45], %69 {strides = array<i32>} : memref<128x1xf32, #tpu.memory_space<vmem>>, vector<128x1xf32>,
    } else {
    }
    %c0 = arith.constant 0 : index
    %c0_1 = arith.constant 0 : index
    %3 = vector.load %arg2[%c0, %c0_1] : memref<128x128xbf16, #tpu.memory_space<vmem>>, vector<128x128xbf16>
    %c0_2 = arith.constant 0 : index
    %c0_3 = arith.constant 0 : index
    %4 = vector.load %arg3[%c0_2, %c0_3] : memref<128x128xbf16, #tpu.memory_space<vmem>>, vector<128x128xbf16>
    %cst = arith.constant dense<0.000000e+00> : vector<128x128xf32>
    %5 = tpu.matmul %3, %4, %cst {dimension_numbers = #tpu.dot_dimension_numbers<[1], [0], [0], [1], [0, 0, 1, 1], [], []>} : vector<128x128xbf16>, vector<128x128xbf16>, vector<128x128xf32> -> vector<128x128xf32>
    %cst_4 = arith.constant 14.2857141 : f32
    %6 = vector.broadcast %cst_4 : f32 to vector<128x128xf32>
    %7 = arith.mulf %5, %6 : vector<128x128xf32>
    %c128_i32 = arith.constant 128 : i32
    %8 = arith.muli %arg0, %c128_i32 : i32
    %9 = tpu.iota {dimensions = array<i32: 0>} : vector<128x1xi32>
    %10 = vector.broadcast %8 : i32 to vector<128x1xi32>
    %11 = arith.addi %10, %9 : vector<128x1xi32>
    %c128_i32_5 = arith.constant 128 : i32
    %12 = arith.muli %arg1, %c128_i32_5 : i32
    %13 = tpu.iota {dimensions = array<i32: 1>} : vector<1x128xi32>
    %14 = vector.broadcast %12 : i32 to vector<1x128xi32>
    %15 = arith.addi %14, %13 : vector<1x128xi32>
    %c0_6 = arith.constant 0 : index
    %c0_7 = arith.constant 0 : index
    %16 = vector.load %arg4[%c0_6, %c0_7] : memref<128x1xi32, #tpu.memory_space<vmem>>, vector<128x1xi32>
    %c0_8 = arith.constant 0 : index
    %c0_9 = arith.constant 0 : index
    %17 = vector.load %arg5[%c0_8, %c0_9] : memref<1x128xi32, #tpu.memory_space<vmem>>, vector<1x128xi32>
    %c0_i32_10 = arith.constant 0 : i32
    %18 = vector.broadcast %c0_i32_10 : i32 to vector<1x128xi32>
    %19 = arith.cmpi sge, %17, %18 : vector<1x128xi32>
    %20 = vector.broadcast %11 : vector<128x1xi32> to vector<128x128xi32>
    %21 = vector.broadcast %15 : vector<1x128xi32> to vector<128x128xi32>
    %22 = arith.cmpi ne, %20, %21 : vector<128x128xi32>
    %23 = vector.broadcast %19 : vector<1x128xi1> to vector<128x128xi1>
    %24 = arith.andi %23, %22 : vector<128x128xi1>
    %25 = vector.broadcast %16 : vector<128x1xi32> to vector<128x128xi32>
    %26 = vector.broadcast %17 : vector<1x128xi32> to vector<128x128xi32>
    %27 = arith.cmpi eq, %25, %26 : vector<128x128xi32>
    %28 = arith.andi %27, %24 : vector<128x128xi1>
    %29 = arith.extui %28 : vector<128x128xi1> to vector<128x128xi32>
    %30 = arith.sitofp %29 : vector<128x128xi32> to vector<128x128xf32>
    %cst_11 = arith.constant -1.000000e+30 : f32
    %31 = vector.broadcast %cst_11 : f32 to vector<128x128xf32>
    %32 = arith.select %24, %7, %31 : vector<128x128xi1>, vector<128x128xf32>
    %c0_12 = arith.constant 0 : index
    %c0_13 = arith.constant 0 : index
    %33 = vector.load %arg7[%c0_12, %c0_13] : memref<128x1xf32, #tpu.memory_space<vmem>>, vector<128x1xf32>
    %cst_14 = arith.constant dense<0xFF800000> : vector<128xf32>
    %34 = vector.multi_reduction <maximumf>, %32, %cst_14 [1] : vector<128x128xf32> to vector<128xf32>
    %35 = vector.shape_cast %34 : vector<128xf32> to vector<128x1xf32>
    %36 = arith.maximumf %33, %35 : vector<128x1xf32>
    %37 = arith.subf %33, %36 : vector<128x1xf32>
    %38 = math.exp %37 : vector<128x1xf32>
    %39 = vector.broadcast %36 : vector<128x1xf32> to vector<128x128xf32>
    %40 = arith.subf %32, %39 : vector<128x128xf32>
    %41 = math.exp %40 : vector<128x128xf32>
    %c0_15 = arith.constant 0 : index
    %c0_16 = arith.constant 0 : index
    %42 = vector.load %arg8[%c0_15, %c0_16] : memref<128x1xf32, #tpu.memory_space<vmem>>, vector<128x1xf32>
    %43 = arith.mulf %38, %42 : vector<128x1xf32>
    %cst_17 = arith.constant dense<0.000000e+00> : vector<128xf32>
    %44 = vector.multi_reduction <add>, %41, %cst_17 [1] : vector<128x128xf32> to vector<128xf32>
    %45 = vector.shape_cast %44 : vector<128xf32> to vector<128x1xf32>
    %46 = arith.addf %43, %45 : vector<128x1xf32>
    %c0_18 = arith.constant 0 : index
    %c0_19 = arith.constant 0 : index
    %47 = vector.load %arg8[%c0_18, %c0_19] : memref<128x1xf32, #tpu.memory_space<vmem>>, vector<128x1xf32>
    tpu.vector_store %arg8[%c0_18, %c0_19], %46 {strides = array<i32>} : memref<128x1xf32, #tpu.memory_space<vmem>>, vector<128x1xf32>,
    %c0_20 = arith.constant 0 : index
    %c0_21 = arith.constant 0 : index
    %48 = vector.load %arg7[%c0_20, %c0_21] : memref<128x1xf32, #tpu.memory_space<vmem>>, vector<128x1xf32>
    tpu.vector_store %arg7[%c0_20, %c0_21], %36 {strides = array<i32>} : memref<128x1xf32, #tpu.memory_space<vmem>>, vector<128x1xf32>,
    %c0_22 = arith.constant 0 : index
    %c0_23 = arith.constant 0 : index
    %49 = vector.load %arg9[%c0_22, %c0_23] : memref<128x1xf32, #tpu.memory_space<vmem>>, vector<128x1xf32>
    %50 = arith.mulf %30, %32 : vector<128x128xf32>
    %cst_24 = arith.constant dense<0.000000e+00> : vector<128xf32>
    %51 = vector.multi_reduction <add>, %50, %cst_24 [1] : vector<128x128xf32> to vector<128xf32>
    %52 = vector.shape_cast %51 : vector<128xf32> to vector<128x1xf32>
    %53 = arith.addf %49, %52 : vector<128x1xf32>
    %c0_25 = arith.constant 0 : index
    %c0_26 = arith.constant 0 : index
    %54 = vector.load %arg9[%c0_25, %c0_26] : memref<128x1xf32, #tpu.memory_space<vmem>>, vector<128x1xf32>
    tpu.vector_store %arg9[%c0_25, %c0_26], %53 {strides = array<i32>} : memref<128x1xf32, #tpu.memory_space<vmem>>, vector<128x1xf32>,
    %c0_27 = arith.constant 0 : index
    %c0_28 = arith.constant 0 : index
    %55 = vector.load %arg10[%c0_27, %c0_28] : memref<128x1xf32, #tpu.memory_space<vmem>>, vector<128x1xf32>
    %cst_29 = arith.constant dense<0.000000e+00> : vector<128xf32>
    %56 = vector.multi_reduction <add>, %30, %cst_29 [1] : vector<128x128xf32> to vector<128xf32>
    %57 = vector.shape_cast %56 : vector<128xf32> to vector<128x1xf32>
    %58 = arith.addf %55, %57 : vector<128x1xf32>
    %c0_30 = arith.constant 0 : index
    %c0_31 = arith.constant 0 : index
    %59 = vector.load %arg10[%c0_30, %c0_31] : memref<128x1xf32, #tpu.memory_space<vmem>>, vector<128x1xf32>
    tpu.vector_store %arg10[%c0_30, %c0_31], %58 {strides = array<i32>} : memref<128x1xf32, #tpu.memory_space<vmem>>, vector<128x1xf32>,
    %c0_i32_32 = arith.constant 0 : i32
    %60 = arith.cmpi eq, %arg1, %c0_i32_32 : i32
    %61 = arith.extui %60 : i1 to i32
    %c0_i32_33 = arith.constant 0 : i32
    %62 = arith.cmpi ne, %61, %c0_i32_33 : i32
    scf.if %62 {
      %c0_34 = arith.constant 0 : index
      %c0_35 = arith.constant 0 : index
      %63 = vector.load %arg7[%c0_34, %c0_35] : memref<128x1xf32, #tpu.memory_space<vmem>>, vector<128x1xf32>
      %c0_36 = arith.constant 0 : index
      %c0_37 = arith.constant 0 : index
      %64 = vector.load %arg8[%c0_36, %c0_37] : memref<128x1xf32, #tpu.memory_space<vmem>>, vector<128x1xf32>
      %65 = math.log %64 : vector<128x1xf32>
      %66 = arith.addf %63, %65 : vector<128x1xf32>
      %c0_38 = arith.constant 0 : index
      %c0_39 = arith.constant 0 : index
      %67 = vector.load %arg10[%c0_38, %c0_39] : memref<128x1xf32, #tpu.memory_space<vmem>>, vector<128x1xf32>
      %c0_40 = arith.constant 0 : index
      %c0_41 = arith.constant 0 : index
      %68 = vector.load %arg9[%c0_40, %c0_41] : memref<128x1xf32, #tpu.memory_space<vmem>>, vector<128x1xf32>
      %cst_42 = arith.constant 1.000000e+00 : f32
      %69 = vector.broadcast %cst_42 : f32 to vector<128x1xf32>
      %70 = arith.maximumf %67, %69 : vector<128x1xf32>
      %71 = arith.divf %68, %70 : vector<128x1xf32>
      %72 = arith.subf %71, %66 : vector<128x1xf32>
      %c128_i32_43 = arith.constant 128 : i32
      %73 = arith.muli %arg0, %c128_i32_43 : i32
      %74 = tpu.iota {dimensions = array<i32: 0>} : vector<128x1xi32>
      %75 = vector.broadcast %73 : i32 to vector<128x1xi32>
      %76 = arith.addi %75, %74 : vector<128x1xi32>
      %c16_i32 = arith.constant 16 : i32
      %77 = vector.broadcast %c16_i32 : i32 to vector<128x1xi32>
      %78 = arith.cmpi slt, %76, %77 : vector<128x1xi32>
      %cst_44 = arith.constant 0.000000e+00 : f32
      %79 = vector.broadcast %cst_44 : f32 to vector<128x1xf32>
      %80 = arith.cmpf ogt, %67, %79 : vector<128x1xf32>
      %81 = arith.andi %78, %80 : vector<128x1xi1>
      %cst_45 = arith.constant -1.000000e+00 : f32
      %82 = vector.broadcast %cst_45 : f32 to vector<128x1xf32>
      %83 = arith.mulf %82, %72 : vector<128x1xf32>
      %cst_46 = arith.constant 0.000000e+00 : f32
      %84 = vector.broadcast %cst_46 : f32 to vector<128x1xf32>
      %85 = arith.select %81, %83, %84 : vector<128x1xi1>, vector<128x1xf32>
      %c0_47 = arith.constant 0 : index
      %c0_48 = arith.constant 0 : index
      %86 = vector.load %arg6[%c0_47, %c0_48] : memref<128x1xf32, #tpu.memory_space<vmem>>, vector<128x1xf32>
      tpu.vector_store %arg6[%c0_47, %c0_48], %85 {strides = array<i32>} : memref<128x1xf32, #tpu.memory_space<vmem>>, vector<128x1xf32>,
    } else {
    }
    return
  }
  func.func @transform_0(%arg0: i32, %arg1: i32) -> (i32, i32) {
    %c0_i32 = arith.constant 0 : i32
    %c0_i32_0 = arith.constant 0 : i32
    return %arg0, %c0_i32 : i32, i32
  }
  func.func @transform_1(%arg0: i32, %arg1: i32) -> (i32, i32) {
    %c0_i32 = arith.constant 0 : i32
    %c0_i32_0 = arith.constant 0 : i32
    return %c0_i32, %arg1 : i32, i32
  }
  func.func @transform_2(%arg0: i32, %arg1: i32) -> (i32, i32) {
    %c0_i32 = arith.constant 0 : i32
    %c0_i32_0 = arith.constant 0 : i32
    return %arg0, %c0_i32 : i32, i32
  }
  func.func @transform_3(%arg0: i32, %arg1: i32) -> (i32, i32) {
    %c0_i32 = arith.constant 0 : i32
    %c0_i32_0 = arith.constant 0 : i32
    return %c0_i32, %arg1 : i32, i32
  }
  func.func @transform_4(%arg0: i32, %arg1: i32) -> (i32, i32) {
    %c0_i32 = arith.constant 0 : i32
    %c0_i32_0 = arith.constant 0 : i32
    return %arg0, %c0_i32 : i32, i32
  }
}

</mosaic_0001>

<llo_original>
// kernel: tpu_custom_call.1
$region0: #{tpu_custom_call.1}
  #allocation0 [shape = 'u32[]', space=smem, size = 0x4, offset = 0x4, fixed_abs, tag = 'smem constant byte address 0x4 - core index']
  #allocation1 [shape = 'u32[144,128]{1,0:T(1,128)}', space=vmem, size = 0x12000, scoped, tag = 'internal scratch']
  #allocation2 [shape = 'f32[128,1]{1,0:T(8,128)}', space=vmem, size = 0x10000, scoped, tag = 'scratch operand']
  #allocation3 [shape = 'f32[128,1]{1,0:T(8,128)}', space=vmem, size = 0x10000, scoped, tag = 'scratch operand']
  #allocation4 [shape = 'f32[128,1]{1,0:T(8,128)}', space=vmem, size = 0x10000, scoped, tag = 'scratch operand']
  #allocation5 [shape = 'f32[128,1]{1,0:T(8,128)}', space=vmem, size = 0x10000, scoped, tag = 'scratch operand']
  %s0 = inlined_call_operand.vmem [shape: bf16[128,128], index: 0, kind: input, shape index: {}]
  %s1 = inlined_call_operand.vmem [shape: bf16[128,128], index: 1, kind: input, shape index: {}]
  %s2 = inlined_call_operand.vmem [shape: s32[128,1], index: 2, kind: input, shape index: {}]
  %s3 = inlined_call_operand.vmem [shape: s32[1,128], index: 3, kind: input, shape index: {}]
  %s4 = inlined_call_operand.vmem [shape: f32[128,1], index: 4, kind: output, shape index: {}]
  %s5 = sld [smem:[#allocation0]]
  $region34: #{tpu_custom_call.1} parent=0
    _
  %s7 = ssub.s32 1, %s5
  %s8 = scalar_select 0, %s7, %s5
  // Predicated region
  $region2: #{tpu_custom_call.1} parent=0 // pred_check
    _
  $region3: #{tpu_custom_call.1} parent=0 // pred_check_branch
    %10 = sbr.rel (0) target = $region5
  $region4: #{tpu_custom_call.1} parent=0 // pred_region
    _
  $region5: #{tpu_custom_call.1} parent=0 // pred_fallthru
    _
  // Predicated region
  $region6: #{tpu_custom_call.1} parent=0 // pred_check
    _
  $region7: #{tpu_custom_call.1} parent=0 // pred_check_branch
    %12 = sbr.rel (0) target = $region9
  $region8: #{tpu_custom_call.1} parent=0 // pred_region
    _
  $region9: #{tpu_custom_call.1} parent=0 // pred_fallthru
    _
  // Predicated region
  $region10: #{tpu_custom_call.1} parent=0 // pred_check
    _
  $region11: #{tpu_custom_call.1} parent=0 // pred_check_branch
    %14 = sbr.rel (0) target = $region13
  $region12: #{tpu_custom_call.1} parent=0 // pred_region
    _
  $region13: #{tpu_custom_call.1} parent=0 // pred_fallthru
    _
  // Predicated region
  $region14: #{tpu_custom_call.1} parent=0 // pred_check
    _
  $region15: #{tpu_custom_call.1} parent=0 // pred_check_branch
    %16 = sbr.rel (0) target = $region17
  $region16: #{tpu_custom_call.1} parent=0 // pred_region
    _
  $region17: #{tpu_custom_call.1} parent=0 // pred_fallthru
    _
  %p18 = scmp.eq.s32.totalorder 0, 0
  // Predicated region
  $region18: #{tpu_custom_call.1} parent=0 // pred_check
    %p19 = pneg %p18
  $region19: #{tpu_custom_call.1} parent=0 // pred_check_branch
    %21 = sbr.rel (%p19) target = $region21
  $region20: #{tpu_custom_call.1} parent=0 // pred_region
    %vm22 = vcmask 7168
    %23 = vst.msk [vmem:[#allocation2] sm:$0xff] %vm22, -inf
    %24 = vst.msk [vmem:[#allocation2 + $0x8] sm:$0xff] %vm22, -inf
    %25 = vst.msk [vmem:[#allocation2 + $0x10] sm:$0xff] %vm22, -inf
    %26 = vst.msk [vmem:[#allocation2 + $0x18] sm:$0xff] %vm22, -inf
    %27 = vst.msk [vmem:[#allocation2 + $0x20] sm:$0xff] %vm22, -inf
    %28 = vst.msk [vmem:[#allocation2 + $0x28] sm:$0xff] %vm22, -inf
    %29 = vst.msk [vmem:[#allocation2 + $0x30] sm:$0xff] %vm22, -inf
    %30 = vst.msk [vmem:[#allocation2 + $0x38] sm:$0xff] %vm22, -inf
    %31 = vst.msk [vmem:[#allocation2 + $0x40] sm:$0xff] %vm22, -inf
    %32 = vst.msk [vmem:[#allocation2 + $0x48] sm:$0xff] %vm22, -inf
    %33 = vst.msk [vmem:[#allocation2 + $0x50] sm:$0xff] %vm22, -inf
    %34 = vst.msk [vmem:[#allocation2 + $0x58] sm:$0xff] %vm22, -inf
    %35 = vst.msk [vmem:[#allocation2 + $0x60] sm:$0xff] %vm22, -inf
    %36 = vst.msk [vmem:[#allocation2 + $0x68] sm:$0xff] %vm22, -inf
    %37 = vst.msk [vmem:[#allocation2 + $0x70] sm:$0xff] %vm22, -inf
    %38 = vst.msk [vmem:[#allocation2 + $0x78] sm:$0xff] %vm22, -inf
    %39 = vst.msk [vmem:[#allocation3] sm:$0xff] %vm22, 0.0
    %40 = vst.msk [vmem:[#allocation3 + $0x8] sm:$0xff] %vm22, 0.0
    %41 = vst.msk [vmem:[#allocation3 + $0x10] sm:$0xff] %vm22, 0.0
    %42 = vst.msk [vmem:[#allocation3 + $0x18] sm:$0xff] %vm22, 0.0
    %43 = vst.msk [vmem:[#allocation3 + $0x20] sm:$0xff] %vm22, 0.0
    %44 = vst.msk [vmem:[#allocation3 + $0x28] sm:$0xff] %vm22, 0.0
    %45 = vst.msk [vmem:[#allocation3 + $0x30] sm:$0xff] %vm22, 0.0
    %46 = vst.msk [vmem:[#allocation3 + $0x38] sm:$0xff] %vm22, 0.0
    %47 = vst.msk [vmem:[#allocation3 + $0x40] sm:$0xff] %vm22, 0.0
    %48 = vst.msk [vmem:[#allocation3 + $0x48] sm:$0xff] %vm22, 0.0
    %49 = vst.msk [vmem:[#allocation3 + $0x50] sm:$0xff] %vm22, 0.0
    %50 = vst.msk [vmem:[#allocation3 + $0x58] sm:$0xff] %vm22, 0.0
    %51 = vst.msk [vmem:[#allocation3 + $0x60] sm:$0xff] %vm22, 0.0
    %52 = vst.msk [vmem:[#allocation3 + $0x68] sm:$0xff] %vm22, 0.0
    %53 = vst.msk [vmem:[#allocation3 + $0x70] sm:$0xff] %vm22, 0.0
    %54 = vst.msk [vmem:[#allocation3 + $0x78] sm:$0xff] %vm22, 0.0
    %55 = vst.msk [vmem:[#allocation4] sm:$0xff] %vm22, 0.0
    %56 = vst.msk [vmem:[#allocation4 + $0x8] sm:$0xff] %vm22, 0.0
    %57 = vst.msk [vmem:[#allocation4 + $0x10] sm:$0xff] %vm22, 0.0
    %58 = vst.msk [vmem:[#allocation4 + $0x18] sm:$0xff] %vm22, 0.0
    %59 = vst.msk [vmem:[#allocation4 + $0x20] sm:$0xff] %vm22, 0.0
    %60 = vst.msk [vmem:[#allocation4 + $0x28] sm:$0xff] %vm22, 0.0
    %61 = vst.msk [vmem:[#allocation4 + $0x30] sm:$0xff] %vm22, 0.0
    %62 = vst.msk [vmem:[#allocation4 + $0x38] sm:$0xff] %vm22, 0.0
    %63 = vst.msk [vmem:[#allocation4 + $0x40] sm:$0xff] %vm22, 0.0
    %64 = vst.msk [vmem:[#allocation4 + $0x48] sm:$0xff] %vm22, 0.0
    %65 = vst.msk [vmem:[#allocation4 + $0x50] sm:$0xff] %vm22, 0.0
    %66 = vst.msk [vmem:[#allocation4 + $0x58] sm:$0xff] %vm22, 0.0
    %67 = vst.msk [vmem:[#allocation4 + $0x60] sm:$0xff] %vm22, 0.0
    %68 = vst.msk [vmem:[#allocation4 + $0x68] sm:$0xff] %vm22, 0.0
    %69 = vst.msk [vmem:[#allocation4 + $0x70] sm:$0xff] %vm22, 0.0
    %70 = vst.msk [vmem:[#allocation4 + $0x78] sm:$0xff] %vm22, 0.0
    %71 = vst.msk [vmem:[#allocation5] sm:$0xff] %vm22, 0.0
    %72 = vst.msk [vmem:[#allocation5 + $0x8] sm:$0xff] %vm22, 0.0
    %73 = vst.msk [vmem:[#allocation5 + $0x10] sm:$0xff] %vm22, 0.0
    %74 = vst.msk [vmem:[#allocation5 + $0x18] sm:$0xff] %vm22, 0.0
    %75 = vst.msk [vmem:[#allocation5 + $0x20] sm:$0xff] %vm22, 0.0
    %76 = vst.msk [vmem:[#allocation5 + $0x28] sm:$0xff] %vm22, 0.0
    %77 = vst.msk [vmem:[#allocation5 + $0x30] sm:$0xff] %vm22, 0.0
    %78 = vst.msk [vmem:[#allocation5 + $0x38] sm:$0xff] %vm22, 0.0
    %79 = vst.msk [vmem:[#allocation5 + $0x40] sm:$0xff] %vm22, 0.0
    %80 = vst.msk [vmem:[#allocation5 + $0x48] sm:$0xff] %vm22, 0.0
    %81 = vst.msk [vmem:[#allocation5 + $0x50] sm:$0xff] %vm22, 0.0
    %82 = vst.msk [vmem:[#allocation5 + $0x58] sm:$0xff] %vm22, 0.0
    %83 = vst.msk [vmem:[#allocation5 + $0x60] sm:$0xff] %vm22, 0.0
    %84 = vst.msk [vmem:[#allocation5 + $0x68] sm:$0xff] %vm22, 0.0
    %85 = vst.msk [vmem:[#allocation5 + $0x70] sm:$0xff] %vm22, 0.0
    %86 = vst.msk [vmem:[#allocation5 + $0x78] sm:$0xff] %vm22, 0.0
  $region21: #{tpu_custom_call.1} parent=0 // pred_fallthru
    _
  %v87 = vld [vmem:[%s0] sm:$0xf]
  %v88 = vld [vmem:[%s0 + $0x4] sm:$0xf]
  %v89 = vld [vmem:[%s0 + $0x8] sm:$0xf]
  %v90 = vld [vmem:[%s0 + $0xc] sm:$0xf]
  %v91 = vld [vmem:[%s0 + $0x10] sm:$0xf]
  %v92 = vld [vmem:[%s0 + $0x14] sm:$0xf]
  %v93 = vld [vmem:[%s0 + $0x18] sm:$0xf]
  %v94 = vld [vmem:[%s0 + $0x1c] sm:$0xf]
  %v95 = vld [vmem:[%s0 + $0x20] sm:$0xf]
  %v96 = vld [vmem:[%s0 + $0x24] sm:$0xf]
  %v97 = vld [vmem:[%s0 + $0x28] sm:$0xf]
  %v98 = vld [vmem:[%s0 + $0x2c] sm:$0xf]
  %v99 = vld [vmem:[%s0 + $0x30] sm:$0xf]
  %v100 = vld [vmem:[%s0 + $0x34] sm:$0xf]
  %v101 = vld [vmem:[%s0 + $0x38] sm:$0xf]
  %v102 = vld [vmem:[%s0 + $0x3c] sm:$0xf]
  %v103 = vld [vmem:[%s1] sm:$0xf]
  %v104 = vld [vmem:[%s1 + $0x4] sm:$0xf]
  %v105 = vld [vmem:[%s1 + $0x8] sm:$0xf]
  %v106 = vld [vmem:[%s1 + $0xc] sm:$0xf]
  %v107 = vld [vmem:[%s1 + $0x10] sm:$0xf]
  %v108 = vld [vmem:[%s1 + $0x14] sm:$0xf]
  %v109 = vld [vmem:[%s1 + $0x18] sm:$0xf]
  %v110 = vld [vmem:[%s1 + $0x1c] sm:$0xf]
  %v111 = vld [vmem:[%s1 + $0x20] sm:$0xf]
  %v112 = vld [vmem:[%s1 + $0x24] sm:$0xf]
  %v113 = vld [vmem:[%s1 + $0x28] sm:$0xf]
  %v114 = vld [vmem:[%s1 + $0x2c] sm:$0xf]
  %v115 = vld [vmem:[%s1 + $0x30] sm:$0xf]
  %v116 = vld [vmem:[%s1 + $0x34] sm:$0xf]
  %v117 = vld [vmem:[%s1 + $0x38] sm:$0xf]
  %v118 = vld [vmem:[%s1 + $0x3c] sm:$0xf]
  %v135 = vunpack.c.l.b16 %v87
  %v136 = vunpack.c.l.b16 %v88
  %v137 = vunpack.c.l.b16 %v89
  %v138 = vunpack.c.l.b16 %v90
  %v139 = vunpack.c.l.b16 %v91
  %v140 = vunpack.c.l.b16 %v92
  %v141 = vunpack.c.l.b16 %v93
  %v142 = vunpack.c.l.b16 %v94
  %v143 = vunpack.c.l.b16 %v95
  %v144 = vunpack.c.l.b16 %v96
  %v145 = vunpack.c.l.b16 %v97
  %v146 = vunpack.c.l.b16 %v98
  %v147 = vunpack.c.l.b16 %v99
  %v148 = vunpack.c.l.b16 %v100
  %v149 = vunpack.c.l.b16 %v101
  %v150 = vunpack.c.l.b16 %v102
  %v151 = vpack.c.b16 %v136, %v135
  %v152 = vpack.c.b16 %v138, %v137
  %v153 = vpack.c.b16 %v140, %v139
  %v154 = vpack.c.b16 %v142, %v141
  %v155 = vpack.c.b16 %v144, %v143
  %v156 = vpack.c.b16 %v146, %v145
  %v157 = vpack.c.b16 %v148, %v147
  %v158 = vpack.c.b16 %v150, %v149
  %v183 = vunpack.c.l.b16 %v103
  %v184 = vunpack.c.l.b16 %v104
  %v185 = vunpack.c.l.b16 %v105
  %v186 = vunpack.c.l.b16 %v106
  %v187 = vunpack.c.l.b16 %v107
  %v188 = vunpack.c.l.b16 %v108
  %v189 = vunpack.c.l.b16 %v109
  %v190 = vunpack.c.l.b16 %v110
  %v191 = vunpack.c.l.b16 %v111
  %v192 = vunpack.c.l.b16 %v112
  %v193 = vunpack.c.l.b16 %v113
  %v194 = vunpack.c.l.b16 %v114
  %v195 = vunpack.c.l.b16 %v115
  %v196 = vunpack.c.l.b16 %v116
  %v197 = vunpack.c.l.b16 %v117
  %v198 = vunpack.c.l.b16 %v118
  %v199 = vpack.c.b16 %v184, %v183
  %v200 = vpack.c.b16 %v186, %v185
  %v201 = vpack.c.b16 %v188, %v187
  %v202 = vpack.c.b16 %v190, %v189
  %v203 = vpack.c.b16 %v192, %v191
  %v204 = vpack.c.b16 %v194, %v193
  %v205 = vpack.c.b16 %v196, %v195
  %v206 = vpack.c.b16 %v198, %v197
  %215 = vmatprep.subr.bf16.mxu0 0
  %216 = vmatpush1.bf16.msra.mxu0 %v206
  %217 = vmatprep.subr.bf16.mxu0 0
  %218 = vmatpush1.bf16.msra.mxu0 %v205
  %219 = vmatprep.subr.bf16.mxu0 0
  %220 = vmatpush1.bf16.msra.mxu0 %v204
  %221 = vmatprep.subr.bf16.mxu0 0
  %222 = vmatpush1.bf16.msra.mxu0 %v203
  %223 = vmatprep.subr.bf16.mxu0 0
  %224 = vmatpush1.bf16.msra.mxu0 %v202
  %225 = vmatprep.subr.bf16.mxu0 0
  %226 = vmatpush1.bf16.msra.mxu0 %v201
  %227 = vmatprep.subr.bf16.mxu0 0
  %228 = vmatpush1.bf16.msra.mxu0 %v200
  %229 = vmatprep.subr.bf16.mxu0 0
  %230 = vmatpush1.bf16.msra.mxu0 %v199
  %231 = vmatprep.subr.bf16.mxu0 0
  %232 = vmatpush2.bf16.msra.mxu0 0
  %233 = vmatprep.subr.bf16.mxu0 0
  %234 = vmatpush2.bf16.msra.mxu0 0
  %235 = vmatprep.subr.bf16.mxu0 0
  %236 = vmatpush2.bf16.msra.mxu0 0
  %237 = vmatprep.subr.bf16.mxu0 0
  %238 = vmatpush2.bf16.msra.mxu0 0
  %239 = vmatprep.subr.bf16.mxu0 0
  %240 = vmatpush2.bf16.msra.mxu0 0
  %241 = vmatprep.subr.bf16.mxu0 0
  %242 = vmatpush2.bf16.msra.mxu0 0
  %243 = vmatprep.subr.bf16.mxu0 0
  %244 = vmatpush2.bf16.msra.mxu0 0
  %245 = vmatprep.subr.bf16.mxu0 0
  %246 = vmatpush2.bf16.msra.mxu0 0
  %247 = vmatprep.mubr.bf16.mxu0 0
  %248 = vmatmul.mubr.bf16.gmra.mxu0 %v151
  %v249 = vpop.f32.mrf.mxu0
  %v250 = vadd.f32 0.0, %v249
  %v251 = vpop.f32.mrf.mxu0
  %v252 = vpop.f32.mrf.mxu0
  %v253 = vadd.f32 0.0, %v252
  %v254 = vpop.f32.mrf.mxu0
  %255 = vmatprep.mubr.bf16.mxu0 0
  %256 = vmatmul.mubr.bf16.gmra.mxu0 %v152
  %v257 = vpop.f32.mrf.mxu0
  %v258 = vadd.f32 0.0, %v257
  %v259 = vpop.f32.mrf.mxu0
  %v260 = vpop.f32.mrf.mxu0
  %v261 = vadd.f32 0.0, %v260
  %v262 = vpop.f32.mrf.mxu0
  %263 = vmatprep.mubr.bf16.mxu0 0
  %264 = vmatmul.mubr.bf16.gmra.mxu0 %v153
  %v265 = vpop.f32.mrf.mxu0
  %v266 = vadd.f32 0.0, %v265
  %v267 = vpop.f32.mrf.mxu0
  %v268 = vpop.f32.mrf.mxu0
  %v269 = vadd.f32 0.0, %v268
  %v270 = vpop.f32.mrf.mxu0
  %271 = vmatprep.mubr.bf16.mxu0 0
  %272 = vmatmul.mubr.bf16.gmra.mxu0 %v154
  %v273 = vpop.f32.mrf.mxu0
  %v274 = vadd.f32 0.0, %v273
  %v275 = vpop.f32.mrf.mxu0
  %v276 = vpop.f32.mrf.mxu0
  %v277 = vadd.f32 0.0, %v276
  %v278 = vpop.f32.mrf.mxu0
  %279 = vmatprep.mubr.bf16.mxu0 0
  %280 = vmatmul.mubr.bf16.gmra.mxu0 %v155
  %v281 = vpop.f32.mrf.mxu0
  %v282 = vadd.f32 0.0, %v281
  %v283 = vpop.f32.mrf.mxu0
  %v284 = vpop.f32.mrf.mxu0
  %v285 = vadd.f32 0.0, %v284
  %v286 = vpop.f32.mrf.mxu0
  %287 = vmatprep.mubr.bf16.mxu0 0
  %288 = vmatmul.mubr.bf16.gmra.mxu0 %v156
  %v289 = vpop.f32.mrf.mxu0
  %v290 = vadd.f32 0.0, %v289
  %v291 = vpop.f32.mrf.mxu0
  %v292 = vpop.f32.mrf.mxu0
  %v293 = vadd.f32 0.0, %v292
  %v294 = vpop.f32.mrf.mxu0
  %295 = vmatprep.mubr.bf16.mxu0 0
  %296 = vmatmul.mubr.bf16.gmra.mxu0 %v157
  %v297 = vpop.f32.mrf.mxu0
  %v298 = vadd.f32 0.0, %v297
  %v299 = vpop.f32.mrf.mxu0
  %v300 = vpop.f32.mrf.mxu0
  %v301 = vadd.f32 0.0, %v300
  %v302 = vpop.f32.mrf.mxu0
  %303 = vmatprep.mubr.bf16.mxu0 0
  %304 = vmatmul.mubr.bf16.gmra.mxu0 %v158
  %v305 = vpop.f32.mrf.mxu0
  %v306 = vadd.f32 0.0, %v305
  %v307 = vpop.f32.mrf.mxu0
  %v308 = vpop.f32.mrf.mxu0
  %v309 = vadd.f32 0.0, %v308
  %v310 = vpop.f32.mrf.mxu0
  %311 = vdwg.mxu0
  %v312 = vmul.f32 %v250, 14.285714
  %v313 = vmul.f32 %v253, 14.285714
  %v314 = vmul.f32 %v258, 14.285714
  %v315 = vmul.f32 %v261, 14.285714
  %v316 = vmul.f32 %v266, 14.285714
  %v317 = vmul.f32 %v269, 14.285714
  %v318 = vmul.f32 %v274, 14.285714
  %v319 = vmul.f32 %v277, 14.285714
  %v320 = vmul.f32 %v282, 14.285714
  %v321 = vmul.f32 %v285, 14.285714
  %v322 = vmul.f32 %v290, 14.285714
  %v323 = vmul.f32 %v293, 14.285714
  %v324 = vmul.f32 %v298, 14.285714
  %v325 = vmul.f32 %v301, 14.285714
  %v326 = vmul.f32 %v306, 14.285714
  %v327 = vmul.f32 %v309, 14.285714
  %s328 = smul.u32 0, 128
  %v329 = vlaneseq
  %v330 = vshrl.u32 %v329, 7
  %v331 = vadd.s32 %v330, 8
  %v332 = vadd.s32 %v330, 16
  %v333 = vadd.s32 %v330, 24
  %v334 = vadd.s32 %v330, 32
  %v335 = vadd.s32 %v330, 40
  %v336 = vadd.s32 %v330, 48
  %v337 = vadd.s32 %v330, 56
  %v338 = vadd.s32 %v330, 64
  %v339 = vadd.s32 %v330, 72
  %v340 = vadd.s32 %v330, 80
  %v341 = vadd.s32 %v330, 88
  %v342 = vadd.s32 %v330, 96
  %v343 = vadd.s32 %v330, 104
  %v344 = vadd.s32 %v330, 112
  %v345 = vadd.s32 %v330, 120
  %v346 = vstv %s328
  %v347 = vadd.s32 %v346, %v330
  %v348 = vadd.s32 %v346, %v331
  %v349 = vadd.s32 %v346, %v332
  %v350 = vadd.s32 %v346, %v333
  %v351 = vadd.s32 %v346, %v334
  %v352 = vadd.s32 %v346, %v335
  %v353 = vadd.s32 %v346, %v336
  %v354 = vadd.s32 %v346, %v337
  %v355 = vadd.s32 %v346, %v338
  %v356 = vadd.s32 %v346, %v339
  %v357 = vadd.s32 %v346, %v340
  %v358 = vadd.s32 %v346, %v341
  %v359 = vadd.s32 %v346, %v342
  %v360 = vadd.s32 %v346, %v343
  %v361 = vadd.s32 %v346, %v344
  %v362 = vadd.s32 %v346, %v345
  %s363 = smul.u32 0, 128
  %v364 = vlaneseq
  %v365 = vand.u32 %v364, 127
  %v366 = vstv %s363
  %v367 = vadd.s32 %v366, %v365
  %v368 = vld [vmem:[%s2] sm:$0xff]
  %v369 = vld [vmem:[%s2 + $0x8] sm:$0xff]
  %v370 = vld [vmem:[%s2 + $0x10] sm:$0xff]
  %v371 = vld [vmem:[%s2 + $0x18] sm:$0xff]
  %v372 = vld [vmem:[%s2 + $0x20] sm:$0xff]
  %v373 = vld [vmem:[%s2 + $0x28] sm:$0xff]
  %v374 = vld [vmem:[%s2 + $0x30] sm:$0xff]
  %v375 = vld [vmem:[%s2 + $0x38] sm:$0xff]
  %v376 = vld [vmem:[%s2 + $0x40] sm:$0xff]
  %v377 = vld [vmem:[%s2 + $0x48] sm:$0xff]
  %v378 = vld [vmem:[%s2 + $0x50] sm:$0xff]
  %v379 = vld [vmem:[%s2 + $0x58] sm:$0xff]
  %v380 = vld [vmem:[%s2 + $0x60] sm:$0xff]
  %v381 = vld [vmem:[%s2 + $0x68] sm:$0xff]
  %v382 = vld [vmem:[%s2 + $0x70] sm:$0xff]
  %v383 = vld [vmem:[%s2 + $0x78] sm:$0xff]
  %v384 = vld [vmem:[%s3] sm:$0x1]
  %vm385 = vcmp.ge.s32.totalorder %v384, 0
  %vm386 = vcmp.ne.s32.totalorder %v347, %v367
  %vm387 = vcmp.ne.s32.totalorder %v348, %v367
  %vm388 = vcmp.ne.s32.totalorder %v349, %v367
  %vm389 = vcmp.ne.s32.totalorder %v350, %v367
  %vm390 = vcmp.ne.s32.totalorder %v351, %v367
  %vm391 = vcmp.ne.s32.totalorder %v352, %v367
  %vm392 = vcmp.ne.s32.totalorder %v353, %v367
  %vm393 = vcmp.ne.s32.totalorder %v354, %v367
  %vm394 = vcmp.ne.s32.totalorder %v355, %v367
  %vm395 = vcmp.ne.s32.totalorder %v356, %v367
  %vm396 = vcmp.ne.s32.totalorder %v357, %v367
  %vm397 = vcmp.ne.s32.totalorder %v358, %v367
  %vm398 = vcmp.ne.s32.totalorder %v359, %v367
  %vm399 = vcmp.ne.s32.totalorder %v360, %v367
  %vm400 = vcmp.ne.s32.totalorder %v361, %v367
  %vm401 = vcmp.ne.s32.totalorder %v362, %v367
  %v402 = vsel %vm385, 1, 0
  %v403 = vlaneseq
  %v404 = vshrl.u32 %v403, 7
  %v405 = vsub.s32 0, %v404
  %v406 = vrot.slane %v402, %v405
  %vm407 = vcmp.eq.s32.totalorder %v406, 1
  %vm408 = vmand %vm407, %vm386
  %vm409 = vmand %vm407, %vm387
  %vm410 = vmand %vm407, %vm388
  %vm411 = vmand %vm407, %vm389
  %vm412 = vmand %vm407, %vm390
  %vm413 = vmand %vm407, %vm391
  %vm414 = vmand %vm407, %vm392
  %vm415 = vmand %vm407, %vm393
  %vm416 = vmand %vm407, %vm394
  %vm417 = vmand %vm407, %vm395
  %vm418 = vmand %vm407, %vm396
  %vm419 = vmand %vm407, %vm397
  %vm420 = vmand %vm407, %vm398
  %vm421 = vmand %vm407, %vm399
  %vm422 = vmand %vm407, %vm400
  %vm423 = vmand %vm407, %vm401
  %424 = vset.pattern.permute.xlu0 0
  %425 = vperm.xlu0 %424, %v368
  %v426 = vpop.permute.xlu0 %425
  %427 = vset.pattern.permute.xlu0 0
  %428 = vperm.xlu0 %427, %v369
  %v429 = vpop.permute.xlu0 %428
  %430 = vset.pattern.permute.xlu0 0
  %431 = vperm.xlu0 %430, %v370
  %v432 = vpop.permute.xlu0 %431
  %433 = vset.pattern.permute.xlu0 0
  %434 = vperm.xlu0 %433, %v371
  %v435 = vpop.permute.xlu0 %434
  %436 = vset.pattern.permute.xlu0 0
  %437 = vperm.xlu0 %436, %v372
  %v438 = vpop.permute.xlu0 %437
  %439 = vset.pattern.permute.xlu0 0
  %440 = vperm.xlu0 %439, %v373
  %v441 = vpop.permute.xlu0 %440
  %442 = vset.pattern.permute.xlu0 0
  %443 = vperm.xlu0 %442, %v374
  %v444 = vpop.permute.xlu0 %443
  %445 = vset.pattern.permute.xlu0 0
  %446 = vperm.xlu0 %445, %v375
  %v447 = vpop.permute.xlu0 %446
  %448 = vset.pattern.permute.xlu0 0
  %449 = vperm.xlu0 %448, %v376
  %v450 = vpop.permute.xlu0 %449
  %451 = vset.pattern.permute.xlu0 0
  %452 = vperm.xlu0 %451, %v377
  %v453 = vpop.permute.xlu0 %452
  %454 = vset.pattern.permute.xlu0 0
  %455 = vperm.xlu0 %454, %v378
  %v456 = vpop.permute.xlu0 %455
  %457 = vset.pattern.permute.xlu0 0
  %458 = vperm.xlu0 %457, %v379
  %v459 = vpop.permute.xlu0 %458
  %460 = vset.pattern.permute.xlu0 0
  %461 = vperm.xlu0 %460, %v380
  %v462 = vpop.permute.xlu0 %461
  %463 = vset.pattern.permute.xlu0 0
  %464 = vperm.xlu0 %463, %v381
  %v465 = vpop.permute.xlu0 %464
  %466 = vset.pattern.permute.xlu0 0
  %467 = vperm.xlu0 %466, %v382
  %v468 = vpop.permute.xlu0 %467
  %469 = vset.pattern.permute.xlu0 0
  %470 = vperm.xlu0 %469, %v383
  %v471 = vpop.permute.xlu0 %470
  %v472 = vlaneseq
  %v473 = vshrl.u32 %v472, 7
  %v474 = vsub.s32 0, %v473
  %v475 = vrot.slane %v384, %v474
  %vm476 = vcmp.eq.s32.totalorder %v426, %v475
  %vm477 = vcmp.eq.s32.totalorder %v429, %v475
  %vm478 = vcmp.eq.s32.totalorder %v432, %v475
  %vm479 = vcmp.eq.s32.totalorder %v435, %v475
  %vm480 = vcmp.eq.s32.totalorder %v438, %v475
  %vm481 = vcmp.eq.s32.totalorder %v441, %v475
  %vm482 = vcmp.eq.s32.totalorder %v444, %v475
  %vm483 = vcmp.eq.s32.totalorder %v447, %v475
  %vm484 = vcmp.eq.s32.totalorder %v450, %v475
  %vm485 = vcmp.eq.s32.totalorder %v453, %v475
  %vm486 = vcmp.eq.s32.totalorder %v456, %v475
  %vm487 = vcmp.eq.s32.totalorder %v459, %v475
  %vm488 = vcmp.eq.s32.totalorder %v462, %v475
  %vm489 = vcmp.eq.s32.totalorder %v465, %v475
  %vm490 = vcmp.eq.s32.totalorder %v468, %v475
  %vm491 = vcmp.eq.s32.totalorder %v471, %v475
  %vm492 = vmand %vm476, %vm408
  %vm493 = vmand %vm477, %vm409
  %vm494 = vmand %vm478, %vm410
  %vm495 = vmand %vm479, %vm411
  %vm496 = vmand %vm480, %vm412
  %vm497 = vmand %vm481, %vm413
  %vm498 = vmand %vm482, %vm414
  %vm499 = vmand %vm483, %vm415
  %vm500 = vmand %vm484, %vm416
  %vm501 = vmand %vm485, %vm417
  %vm502 = vmand %vm486, %vm418
  %vm503 = vmand %vm487, %vm419
  %vm504 = vmand %vm488, %vm420
  %vm505 = vmand %vm489, %vm421
  %vm506 = vmand %vm490, %vm422
  %vm507 = vmand %vm491, %vm423
  %v508 = vsel %vm492, 1, 0
  %v509 = vsel %vm493, 1, 0
  %v510 = vsel %vm494, 1, 0
  %v511 = vsel %vm495, 1, 0
  %v512 = vsel %vm496, 1, 0
  %v513 = vsel %vm497, 1, 0
  %v514 = vsel %vm498, 1, 0
  %v515 = vsel %vm499, 1, 0
  %v516 = vsel %vm500, 1, 0
  %v517 = vsel %vm501, 1, 0
  %v518 = vsel %vm502, 1, 0
  %v519 = vsel %vm503, 1, 0
  %v520 = vsel %vm504, 1, 0
  %v521 = vsel %vm505, 1, 0
  %v522 = vsel %vm506, 1, 0
  %v523 = vsel %vm507, 1, 0
  %v524 = vcvt.s32.f32 %v508
  %v525 = vcvt.s32.f32 %v509
  %v526 = vcvt.s32.f32 %v510
  %v527 = vcvt.s32.f32 %v511
  %v528 = vcvt.s32.f32 %v512
  %v529 = vcvt.s32.f32 %v513
  %v530 = vcvt.s32.f32 %v514
  %v531 = vcvt.s32.f32 %v515
  %v532 = vcvt.s32.f32 %v516
  %v533 = vcvt.s32.f32 %v517
  %v534 = vcvt.s32.f32 %v518
  %v535 = vcvt.s32.f32 %v519
  %v536 = vcvt.s32.f32 %v520
  %v537 = vcvt.s32.f32 %v521
  %v538 = vcvt.s32.f32 %v522
  %v539 = vcvt.s32.f32 %v523
  %v540 = vsel %vm408, %v312, -1e+30
  %v541 = vsel %vm409, %v313, -1e+30
  %v542 = vsel %vm410, %v314, -1e+30
  %v543 = vsel %vm411, %v315, -1e+30
  %v544 = vsel %vm412, %v316, -1e+30
  %v545 = vsel %vm413, %v317, -1e+30
  %v546 = vsel %vm414, %v318, -1e+30
  %v547 = vsel %vm415, %v319, -1e+30
  %v548 = vsel %vm416, %v320, -1e+30
  %v549 = vsel %vm417, %v321, -1e+30
  %v550 = vsel %vm418, %v322, -1e+30
  %v551 = vsel %vm419, %v323, -1e+30
  %v552 = vsel %vm420, %v324, -1e+30
  %v553 = vsel %vm421, %v325, -1e+30
  %v554 = vsel %vm422, %v326, -1e+30
  %v555 = vsel %vm423, %v327, -1e+30
  %v556 = vld [vmem:[#allocation2] sm:$0xff]
  %v557 = vld [vmem:[#allocation2 + $0x8] sm:$0xff]
  %v558 = vld [vmem:[#allocation2 + $0x10] sm:$0xff]
  %v559 = vld [vmem:[#allocation2 + $0x18] sm:$0xff]
  %v560 = vld [vmem:[#allocation2 + $0x20] sm:$0xff]
  %v561 = vld [vmem:[#allocation2 + $0x28] sm:$0xff]
  %v562 = vld [vmem:[#allocation2 + $0x30] sm:$0xff]
  %v563 = vld [vmem:[#allocation2 + $0x38] sm:$0xff]
  %v564 = vld [vmem:[#allocation2 + $0x40] sm:$0xff]
  %v565 = vld [vmem:[#allocation2 + $0x48] sm:$0xff]
  %v566 = vld [vmem:[#allocation2 + $0x50] sm:$0xff]
  %v567 = vld [vmem:[#allocation2 + $0x58] sm:$0xff]
  %v568 = vld [vmem:[#allocation2 + $0x60] sm:$0xff]
  %v569 = vld [vmem:[#allocation2 + $0x68] sm:$0xff]
  %v570 = vld [vmem:[#allocation2 + $0x70] sm:$0xff]
  %v571 = vld [vmem:[#allocation2 + $0x78] sm:$0xff]
  %572 = vmax.xlane.f32.xlu0 %v540
  %v573 = vpop.xlane.xlu0 %572
  %574 = vmax.xlane.f32.xlu0 %v541
  %v575 = vpop.xlane.xlu0 %574
  %576 = vmax.xlane.f32.xlu0 %v542
  %v577 = vpop.xlane.xlu0 %576
  %578 = vmax.xlane.f32.xlu0 %v543
  %v579 = vpop.xlane.xlu0 %578
  %580 = vmax.xlane.f32.xlu0 %v544
  %v581 = vpop.xlane.xlu0 %580
  %582 = vmax.xlane.f32.xlu0 %v545
  %v583 = vpop.xlane.xlu0 %582
  %584 = vmax.xlane.f32.xlu0 %v546
  %v585 = vpop.xlane.xlu0 %584
  %586 = vmax.xlane.f32.xlu0 %v547
  %v587 = vpop.xlane.xlu0 %586
  %588 = vmax.xlane.f32.xlu0 %v548
  %v589 = vpop.xlane.xlu0 %588
  %590 = vmax.xlane.f32.xlu0 %v549
  %v591 = vpop.xlane.xlu0 %590
  %592 = vmax.xlane.f32.xlu0 %v550
  %v593 = vpop.xlane.xlu0 %592
  %594 = vmax.xlane.f32.xlu0 %v551
  %v595 = vpop.xlane.xlu0 %594
  %596 = vmax.xlane.f32.xlu0 %v552
  %v597 = vpop.xlane.xlu0 %596
  %598 = vmax.xlane.f32.xlu0 %v553
  %v599 = vpop.xlane.xlu0 %598
  %600 = vmax.xlane.f32.xlu0 %v554
  %v601 = vpop.xlane.xlu0 %600
  %602 = vmax.xlane.f32.xlu0 %v555
  %v603 = vpop.xlane.xlu0 %602
  %v604 = vmax.f32 %v556, %v573
  %v605 = vmax.f32 %v557, %v575
  %v606 = vmax.f32 %v558, %v577
  %v607 = vmax.f32 %v559, %v579
  %v608 = vmax.f32 %v560, %v581
  %v609 = vmax.f32 %v561, %v583
  %v610 = vmax.f32 %v562, %v585
  %v611 = vmax.f32 %v563, %v587
  %v612 = vmax.f32 %v564, %v589
  %v613 = vmax.f32 %v565, %v591
  %v614 = vmax.f32 %v566, %v593
  %v615 = vmax.f32 %v567, %v595
  %v616 = vmax.f32 %v568, %v597
  %v617 = vmax.f32 %v569, %v599
  %v618 = vmax.f32 %v570, %v601
  %v619 = vmax.f32 %v571, %v603
  %v620 = vsub.f32 %v556, %v604
  %v621 = vsub.f32 %v557, %v605
  %v622 = vsub.f32 %v558, %v606
  %v623 = vsub.f32 %v559, %v607
  %v624 = vsub.f32 %v560, %v608
  %v625 = vsub.f32 %v561, %v609
  %v626 = vsub.f32 %v562, %v610
  %v627 = vsub.f32 %v563, %v611
  %v628 = vsub.f32 %v564, %v612
  %v629 = vsub.f32 %v565, %v613
  %v630 = vsub.f32 %v566, %v614
  %v631 = vsub.f32 %v567, %v615
  %v632 = vsub.f32 %v568, %v616
  %v633 = vsub.f32 %v569, %v617
  %v634 = vsub.f32 %v570, %v618
  %v635 = vsub.f32 %v571, %v619
  %v636 = vmul.f32 %v620, 1.442695
  %v637 = vpow.pop %v636
  %v638 = vmul.f32 %v621, 1.442695
  %v639 = vpow.pop %v638
  %v640 = vmul.f32 %v622, 1.442695
  %v641 = vpow.pop %v640
  %v642 = vmul.f32 %v623, 1.442695
  %v643 = vpow.pop %v642
  %v644 = vmul.f32 %v624, 1.442695
  %v645 = vpow.pop %v644
  %v646 = vmul.f32 %v625, 1.442695
  %v647 = vpow.pop %v646
  %v648 = vmul.f32 %v626, 1.442695
  %v649 = vpow.pop %v648
  %v650 = vmul.f32 %v627, 1.442695
  %v651 = vpow.pop %v650
  %v652 = vmul.f32 %v628, 1.442695
  %v653 = vpow.pop %v652
  %v654 = vmul.f32 %v629, 1.442695
  %v655 = vpow.pop %v654
  %v656 = vmul.f32 %v630, 1.442695
  %v657 = vpow.pop %v656
  %v658 = vmul.f32 %v631, 1.442695
  %v659 = vpow.pop %v658
  %v660 = vmul.f32 %v632, 1.442695
  %v661 = vpow.pop %v660
  %v662 = vmul.f32 %v633, 1.442695
  %v663 = vpow.pop %v662
  %v664 = vmul.f32 %v634, 1.442695
  %v665 = vpow.pop %v664
  %v666 = vmul.f32 %v635, 1.442695
  %v667 = vpow.pop %v666
  %669 = vset.pattern.permute.xlu0 0
  %670 = vperm.xlu0 %669, %v604
  %v671 = vpop.permute.xlu0 %670
  %674 = vset.pattern.permute.xlu0 0
  %675 = vperm.xlu0 %674, %v605
  %v676 = vpop.permute.xlu0 %675
  %679 = vset.pattern.permute.xlu0 0
  %680 = vperm.xlu0 %679, %v606
  %v681 = vpop.permute.xlu0 %680
  %684 = vset.pattern.permute.xlu0 0
  %685 = vperm.xlu0 %684, %v607
  %v686 = vpop.permute.xlu0 %685
  %689 = vset.pattern.permute.xlu0 0
  %690 = vperm.xlu0 %689, %v608
  %v691 = vpop.permute.xlu0 %690
  %694 = vset.pattern.permute.xlu0 0
  %695 = vperm.xlu0 %694, %v609
  %v696 = vpop.permute.xlu0 %695
  %699 = vset.pattern.permute.xlu0 0
  %700 = vperm.xlu0 %699, %v610
  %v701 = vpop.permute.xlu0 %700
  %704 = vset.pattern.permute.xlu0 0
  %705 = vperm.xlu0 %704, %v611
  %v706 = vpop.permute.xlu0 %705
  %709 = vset.pattern.permute.xlu0 0
  %710 = vperm.xlu0 %709, %v612
  %v711 = vpop.permute.xlu0 %710
  %714 = vset.pattern.permute.xlu0 0
  %715 = vperm.xlu0 %714, %v613
  %v716 = vpop.permute.xlu0 %715
  %719 = vset.pattern.permute.xlu0 0
  %720 = vperm.xlu0 %719, %v614
  %v721 = vpop.permute.xlu0 %720
  %724 = vset.pattern.permute.xlu0 0
  %725 = vperm.xlu0 %724, %v615
  %v726 = vpop.permute.xlu0 %725
  %729 = vset.pattern.permute.xlu0 0
  %730 = vperm.xlu0 %729, %v616
  %v731 = vpop.permute.xlu0 %730
  %734 = vset.pattern.permute.xlu0 0
  %735 = vperm.xlu0 %734, %v617
  %v736 = vpop.permute.xlu0 %735
  %739 = vset.pattern.permute.xlu0 0
  %740 = vperm.xlu0 %739, %v618
  %v741 = vpop.permute.xlu0 %740
  %744 = vset.pattern.permute.xlu0 0
  %745 = vperm.xlu0 %744, %v619
  %v746 = vpop.permute.xlu0 %745
  %v748 = vsub.f32 %v540, %v671
  %v749 = vsub.f32 %v541, %v676
  %v750 = vsub.f32 %v542, %v681
  %v751 = vsub.f32 %v543, %v686
  %v752 = vsub.f32 %v544, %v691
  %v753 = vsub.f32 %v545, %v696
  %v754 = vsub.f32 %v546, %v701
  %v755 = vsub.f32 %v547, %v706
  %v756 = vsub.f32 %v548, %v711
  %v757 = vsub.f32 %v549, %v716
  %v758 = vsub.f32 %v550, %v721
  %v759 = vsub.f32 %v551, %v726
  %v760 = vsub.f32 %v552, %v731
  %v761 = vsub.f32 %v553, %v736
  %v762 = vsub.f32 %v554, %v741
  %v763 = vsub.f32 %v555, %v746
  %v764 = vmul.f32 %v748, 1.442695
  %v765 = vpow.pop %v764
  %v766 = vmul.f32 %v749, 1.442695
  %v767 = vpow.pop %v766
  %v768 = vmul.f32 %v750, 1.442695
  %v769 = vpow.pop %v768
  %v770 = vmul.f32 %v751, 1.442695
  %v771 = vpow.pop %v770
  %v772 = vmul.f32 %v752, 1.442695
  %v773 = vpow.pop %v772
  %v774 = vmul.f32 %v753, 1.442695
  %v775 = vpow.pop %v774
  %v776 = vmul.f32 %v754, 1.442695
  %v777 = vpow.pop %v776
  %v778 = vmul.f32 %v755, 1.442695
  %v779 = vpow.pop %v778
  %v780 = vmul.f32 %v756, 1.442695
  %v781 = vpow.pop %v780
  %v782 = vmul.f32 %v757, 1.442695
  %v783 = vpow.pop %v782
  %v784 = vmul.f32 %v758, 1.442695
  %v785 = vpow.pop %v784
  %v786 = vmul.f32 %v759, 1.442695
  %v787 = vpow.pop %v786
  %v788 = vmul.f32 %v760, 1.442695
  %v789 = vpow.pop %v788
  %v790 = vmul.f32 %v761, 1.442695
  %v791 = vpow.pop %v790
  %v792 = vmul.f32 %v762, 1.442695
  %v793 = vpow.pop %v792
  %v794 = vmul.f32 %v763, 1.442695
  %v795 = vpow.pop %v794
  %v796 = vld [vmem:[#allocation3] sm:$0xff]
  %v797 = vld [vmem:[#allocation3 + $0x8] sm:$0xff]
  %v798 = vld [vmem:[#allocation3 + $0x10] sm:$0xff]
  %v799 = vld [vmem:[#allocation3 + $0x18] sm:$0xff]
  %v800 = vld [vmem:[#allocation3 + $0x20] sm:$0xff]
  %v801 = vld [vmem:[#allocation3 + $0x28] sm:$0xff]
  %v802 = vld [vmem:[#allocation3 + $0x30] sm:$0xff]
  %v803 = vld [vmem:[#allocation3 + $0x38] sm:$0xff]
  %v804 = vld [vmem:[#allocation3 + $0x40] sm:$0xff]
  %v805 = vld [vmem:[#allocation3 + $0x48] sm:$0xff]
  %v806 = vld [vmem:[#allocation3 + $0x50] sm:$0xff]
  %v807 = vld [vmem:[#allocation3 + $0x58] sm:$0xff]
  %v808 = vld [vmem:[#allocation3 + $0x60] sm:$0xff]
  %v809 = vld [vmem:[#allocation3 + $0x68] sm:$0xff]
  %v810 = vld [vmem:[#allocation3 + $0x70] sm:$0xff]
  %v811 = vld [vmem:[#allocation3 + $0x78] sm:$0xff]
  %v812 = vmul.f32 %v637, %v796
  %v813 = vmul.f32 %v639, %v797
  %v814 = vmul.f32 %v641, %v798
  %v815 = vmul.f32 %v643, %v799
  %v816 = vmul.f32 %v645, %v800
  %v817 = vmul.f32 %v647, %v801
  %v818 = vmul.f32 %v649, %v802
  %v819 = vmul.f32 %v651, %v803
  %v820 = vmul.f32 %v653, %v804
  %v821 = vmul.f32 %v655, %v805
  %v822 = vmul.f32 %v657, %v806
  %v823 = vmul.f32 %v659, %v807
  %v824 = vmul.f32 %v661, %v808
  %v825 = vmul.f32 %v663, %v809
  %v826 = vmul.f32 %v665, %v810
  %v827 = vmul.f32 %v667, %v811
  %828 = vadd.xlane.f32.xlu0 %v765
  %v829 = vpop.xlane.xlu0 %828
  %830 = vadd.xlane.f32.xlu0 %v767
  %v831 = vpop.xlane.xlu0 %830
  %832 = vadd.xlane.f32.xlu0 %v769
  %v833 = vpop.xlane.xlu0 %832
  %834 = vadd.xlane.f32.xlu0 %v771
  %v835 = vpop.xlane.xlu0 %834
  %836 = vadd.xlane.f32.xlu0 %v773
  %v837 = vpop.xlane.xlu0 %836
  %838 = vadd.xlane.f32.xlu0 %v775
  %v839 = vpop.xlane.xlu0 %838
  %840 = vadd.xlane.f32.xlu0 %v777
  %v841 = vpop.xlane.xlu0 %840
  %842 = vadd.xlane.f32.xlu0 %v779
  %v843 = vpop.xlane.xlu0 %842
  %844 = vadd.xlane.f32.xlu0 %v781
  %v845 = vpop.xlane.xlu0 %844
  %846 = vadd.xlane.f32.xlu0 %v783
  %v847 = vpop.xlane.xlu0 %846
  %848 = vadd.xlane.f32.xlu0 %v785
  %v849 = vpop.xlane.xlu0 %848
  %850 = vadd.xlane.f32.xlu0 %v787
  %v851 = vpop.xlane.xlu0 %850
  %852 = vadd.xlane.f32.xlu0 %v789
  %v853 = vpop.xlane.xlu0 %852
  %854 = vadd.xlane.f32.xlu0 %v791
  %v855 = vpop.xlane.xlu0 %854
  %856 = vadd.xlane.f32.xlu0 %v793
  %v857 = vpop.xlane.xlu0 %856
  %858 = vadd.xlane.f32.xlu0 %v795
  %v859 = vpop.xlane.xlu0 %858
  %v860 = vadd.f32 %v812, %v829
  %v861 = vadd.f32 %v813, %v831
  %v862 = vadd.f32 %v814, %v833
  %v863 = vadd.f32 %v815, %v835
  %v864 = vadd.f32 %v816, %v837
  %v865 = vadd.f32 %v817, %v839
  %v866 = vadd.f32 %v818, %v841
  %v867 = vadd.f32 %v819, %v843
  %v868 = vadd.f32 %v820, %v845
  %v869 = vadd.f32 %v821, %v847
  %v870 = vadd.f32 %v822, %v849
  %v871 = vadd.f32 %v823, %v851
  %v872 = vadd.f32 %v824, %v853
  %v873 = vadd.f32 %v825, %v855
  %v874 = vadd.f32 %v826, %v857
  %v875 = vadd.f32 %v827, %v859
  %vm876 = vcmask 7168
  %877 = vst.msk [vmem:[#allocation3] sm:$0xff] %vm876, %v860
  %878 = vst.msk [vmem:[#allocation3 + $0x8] sm:$0xff] %vm876, %v861
  %879 = vst.msk [vmem:[#allocation3 + $0x10] sm:$0xff] %vm876, %v862
  %880 = vst.msk [vmem:[#allocation3 + $0x18] sm:$0xff] %vm876, %v863
  %881 = vst.msk [vmem:[#allocation3 + $0x20] sm:$0xff] %vm876, %v864
  %882 = vst.msk [vmem:[#allocation3 + $0x28] sm:$0xff] %vm876, %v865
  %883 = vst.msk [vmem:[#allocation3 + $0x30] sm:$0xff] %vm876, %v866
  %884 = vst.msk [vmem:[#allocation3 + $0x38] sm:$0xff] %vm876, %v867
  %885 = vst.msk [vmem:[#allocation3 + $0x40] sm:$0xff] %vm876, %v868
  %886 = vst.msk [vmem:[#allocation3 + $0x48] sm:$0xff] %vm876, %v869
  %887 = vst.msk [vmem:[#allocation3 + $0x50] sm:$0xff] %vm876, %v870
  %888 = vst.msk [vmem:[#allocation3 + $0x58] sm:$0xff] %vm876, %v871
  %889 = vst.msk [vmem:[#allocation3 + $0x60] sm:$0xff] %vm876, %v872
  %890 = vst.msk [vmem:[#allocation3 + $0x68] sm:$0xff] %vm876, %v873
  %891 = vst.msk [vmem:[#allocation3 + $0x70] sm:$0xff] %vm876, %v874
  %892 = vst.msk [vmem:[#allocation3 + $0x78] sm:$0xff] %vm876, %v875
  %893 = vst.msk [vmem:[#allocation2] sm:$0xff] %vm876, %v604
  %894 = vst.msk [vmem:[#allocation2 + $0x8] sm:$0xff] %vm876, %v605
  %895 = vst.msk [vmem:[#allocation2 + $0x10] sm:$0xff] %vm876, %v606
  %896 = vst.msk [vmem:[#allocation2 + $0x18] sm:$0xff] %vm876, %v607
  %897 = vst.msk [vmem:[#allocation2 + $0x20] sm:$0xff] %vm876, %v608
  %898 = vst.msk [vmem:[#allocation2 + $0x28] sm:$0xff] %vm876, %v609
  %899 = vst.msk [vmem:[#allocation2 + $0x30] sm:$0xff] %vm876, %v610
  %900 = vst.msk [vmem:[#allocation2 + $0x38] sm:$0xff] %vm876, %v611
  %901 = vst.msk [vmem:[#allocation2 + $0x40] sm:$0xff] %vm876, %v612
  %902 = vst.msk [vmem:[#allocation2 + $0x48] sm:$0xff] %vm876, %v613
  %903 = vst.msk [vmem:[#allocation2 + $0x50] sm:$0xff] %vm876, %v614
  %904 = vst.msk [vmem:[#allocation2 + $0x58] sm:$0xff] %vm876, %v615
  %905 = vst.msk [vmem:[#allocation2 + $0x60] sm:$0xff] %vm876, %v616
  %906 = vst.msk [vmem:[#allocation2 + $0x68] sm:$0xff] %vm876, %v617
  %907 = vst.msk [vmem:[#allocation2 + $0x70] sm:$0xff] %vm876, %v618
  %908 = vst.msk [vmem:[#allocation2 + $0x78] sm:$0xff] %vm876, %v619
  %v909 = vld [vmem:[#allocation4] sm:$0xff]
  %v910 = vld [vmem:[#allocation4 + $0x8] sm:$0xff]
  %v911 = vld [vmem:[#allocation4 + $0x10] sm:$0xff]
  %v912 = vld [vmem:[#allocation4 + $0x18] sm:$0xff]
  %v913 = vld [vmem:[#allocation4 + $0x20] sm:$0xff]
  %v914 = vld [vmem:[#allocation4 + $0x28] sm:$0xff]
  %v915 = vld [vmem:[#allocation4 + $0x30] sm:$0xff]
  %v916 = vld [vmem:[#allocation4 + $0x38] sm:$0xff]
  %v917 = vld [vmem:[#allocation4 + $0x40] sm:$0xff]
  %v918 = vld [vmem:[#allocation4 + $0x48] sm:$0xff]
  %v919 = vld [vmem:[#allocation4 + $0x50] sm:$0xff]
  %v920 = vld [vmem:[#allocation4 + $0x58] sm:$0xff]
  %v921 = vld [vmem:[#allocation4 + $0x60] sm:$0xff]
  %v922 = vld [vmem:[#allocation4 + $0x68] sm:$0xff]
  %v923 = vld [vmem:[#allocation4 + $0x70] sm:$0xff]
  %v924 = vld [vmem:[#allocation4 + $0x78] sm:$0xff]
  %v925 = vmul.f32 %v524, %v540
  %v926 = vmul.f32 %v525, %v541
  %v927 = vmul.f32 %v526, %v542
  %v928 = vmul.f32 %v527, %v543
  %v929 = vmul.f32 %v528, %v544
  %v930 = vmul.f32 %v529, %v545
  %v931 = vmul.f32 %v530, %v546
  %v932 = vmul.f32 %v531, %v547
  %v933 = vmul.f32 %v532, %v548
  %v934 = vmul.f32 %v533, %v549
  %v935 = vmul.f32 %v534, %v550
  %v936 = vmul.f32 %v535, %v551
  %v937 = vmul.f32 %v536, %v552
  %v938 = vmul.f32 %v537, %v553
  %v939 = vmul.f32 %v538, %v554
  %v940 = vmul.f32 %v539, %v555
  %941 = vadd.xlane.f32.xlu0 %v925
  %v942 = vpop.xlane.xlu0 %941
  %943 = vadd.xlane.f32.xlu0 %v926
  %v944 = vpop.xlane.xlu0 %943
  %945 = vadd.xlane.f32.xlu0 %v927
  %v946 = vpop.xlane.xlu0 %945
  %947 = vadd.xlane.f32.xlu0 %v928
  %v948 = vpop.xlane.xlu0 %947
  %949 = vadd.xlane.f32.xlu0 %v929
  %v950 = vpop.xlane.xlu0 %949
  %951 = vadd.xlane.f32.xlu0 %v930
  %v952 = vpop.xlane.xlu0 %951
  %953 = vadd.xlane.f32.xlu0 %v931
  %v954 = vpop.xlane.xlu0 %953
  %955 = vadd.xlane.f32.xlu0 %v932
  %v956 = vpop.xlane.xlu0 %955
  %957 = vadd.xlane.f32.xlu0 %v933
  %v958 = vpop.xlane.xlu0 %957
  %959 = vadd.xlane.f32.xlu0 %v934
  %v960 = vpop.xlane.xlu0 %959
  %961 = vadd.xlane.f32.xlu0 %v935
  %v962 = vpop.xlane.xlu0 %961
  %963 = vadd.xlane.f32.xlu0 %v936
  %v964 = vpop.xlane.xlu0 %963
  %965 = vadd.xlane.f32.xlu0 %v937
  %v966 = vpop.xlane.xlu0 %965
  %967 = vadd.xlane.f32.xlu0 %v938
  %v968 = vpop.xlane.xlu0 %967
  %969 = vadd.xlane.f32.xlu0 %v939
  %v970 = vpop.xlane.xlu0 %969
  %971 = vadd.xlane.f32.xlu0 %v940
  %v972 = vpop.xlane.xlu0 %971
  %v973 = vadd.f32 %v909, %v942
  %v974 = vadd.f32 %v910, %v944
  %v975 = vadd.f32 %v911, %v946
  %v976 = vadd.f32 %v912, %v948
  %v977 = vadd.f32 %v913, %v950
  %v978 = vadd.f32 %v914, %v952
  %v979 = vadd.f32 %v915, %v954
  %v980 = vadd.f32 %v916, %v956
  %v981 = vadd.f32 %v917, %v958
  %v982 = vadd.f32 %v918, %v960
  %v983 = vadd.f32 %v919, %v962
  %v984 = vadd.f32 %v920, %v964
  %v985 = vadd.f32 %v921, %v966
  %v986 = vadd.f32 %v922, %v968
  %v987 = vadd.f32 %v923, %v970
  %v988 = vadd.f32 %v924, %v972
  %989 = vst.msk [vmem:[#allocation4] sm:$0xff] %vm876, %v973
  %990 = vst.msk [vmem:[#allocation4 + $0x8] sm:$0xff] %vm876, %v974
  %991 = vst.msk [vmem:[#allocation4 + $0x10] sm:$0xff] %vm876, %v975
  %992 = vst.msk [vmem:[#allocation4 + $0x18] sm:$0xff] %vm876, %v976
  %993 = vst.msk [vmem:[#allocation4 + $0x20] sm:$0xff] %vm876, %v977
  %994 = vst.msk [vmem:[#allocation4 + $0x28] sm:$0xff] %vm876, %v978
  %995 = vst.msk [vmem:[#allocation4 + $0x30] sm:$0xff] %vm876, %v979
  %996 = vst.msk [vmem:[#allocation4 + $0x38] sm:$0xff] %vm876, %v980
  %997 = vst.msk [vmem:[#allocation4 + $0x40] sm:$0xff] %vm876, %v981
  %998 = vst.msk [vmem:[#allocation4 + $0x48] sm:$0xff] %vm876, %v982
  %999 = vst.msk [vmem:[#allocation4 + $0x50] sm:$0xff] %vm876, %v983
  %1000 = vst.msk [vmem:[#allocation4 + $0x58] sm:$0xff] %vm876, %v984
  %1001 = vst.msk [vmem:[#allocation4 + $0x60] sm:$0xff] %vm876, %v985
  %1002 = vst.msk [vmem:[#allocation4 + $0x68] sm:$0xff] %vm876, %v986
  %1003 = vst.msk [vmem:[#allocation4 + $0x70] sm:$0xff] %vm876, %v987
  %1004 = vst.msk [vmem:[#allocation4 + $0x78] sm:$0xff] %vm876, %v988
  %v1005 = vld [vmem:[#allocation5] sm:$0xff]
  %v1006 = vld [vmem:[#allocation5 + $0x8] sm:$0xff]
  %v1007 = vld [vmem:[#allocation5 + $0x10] sm:$0xff]
  %v1008 = vld [vmem:[#allocation5 + $0x18] sm:$0xff]
  %v1009 = vld [vmem:[#allocation5 + $0x20] sm:$0xff]
  %v1010 = vld [vmem:[#allocation5 + $0x28] sm:$0xff]
  %v1011 = vld [vmem:[#allocation5 + $0x30] sm:$0xff]
  %v1012 = vld [vmem:[#allocation5 + $0x38] sm:$0xff]
  %v1013 = vld [vmem:[#allocation5 + $0x40] sm:$0xff]
  %v1014 = vld [vmem:[#allocation5 + $0x48] sm:$0xff]
  %v1015 = vld [vmem:[#allocation5 + $0x50] sm:$0xff]
  %v1016 = vld [vmem:[#allocation5 + $0x58] sm:$0xff]
  %v1017 = vld [vmem:[#allocation5 + $0x60] sm:$0xff]
  %v1018 = vld [vmem:[#allocation5 + $0x68] sm:$0xff]
  %v1019 = vld [vmem:[#allocation5 + $0x70] sm:$0xff]
  %v1020 = vld [vmem:[#allocation5 + $0x78] sm:$0xff]
  %1021 = vadd.xlane.f32.xlu0 %v524
  %v1022 = vpop.xlane.xlu0 %1021
  %1023 = vadd.xlane.f32.xlu0 %v525
  %v1024 = vpop.xlane.xlu0 %1023
  %1025 = vadd.xlane.f32.xlu0 %v526
  %v1026 = vpop.xlane.xlu0 %1025
  %1027 = vadd.xlane.f32.xlu0 %v527
  %v1028 = vpop.xlane.xlu0 %1027
  %1029 = vadd.xlane.f32.xlu0 %v528
  %v1030 = vpop.xlane.xlu0 %1029
  %1031 = vadd.xlane.f32.xlu0 %v529
  %v1032 = vpop.xlane.xlu0 %1031
  %1033 = vadd.xlane.f32.xlu0 %v530
  %v1034 = vpop.xlane.xlu0 %1033
  %1035 = vadd.xlane.f32.xlu0 %v531
  %v1036 = vpop.xlane.xlu0 %1035
  %1037 = vadd.xlane.f32.xlu0 %v532
  %v1038 = vpop.xlane.xlu0 %1037
  %1039 = vadd.xlane.f32.xlu0 %v533
  %v1040 = vpop.xlane.xlu0 %1039
  %1041 = vadd.xlane.f32.xlu0 %v534
  %v1042 = vpop.xlane.xlu0 %1041
  %1043 = vadd.xlane.f32.xlu0 %v535
  %v1044 = vpop.xlane.xlu0 %1043
  %1045 = vadd.xlane.f32.xlu0 %v536
  %v1046 = vpop.xlane.xlu0 %1045
  %1047 = vadd.xlane.f32.xlu0 %v537
  %v1048 = vpop.xlane.xlu0 %1047
  %1049 = vadd.xlane.f32.xlu0 %v538
  %v1050 = vpop.xlane.xlu0 %1049
  %1051 = vadd.xlane.f32.xlu0 %v539
  %v1052 = vpop.xlane.xlu0 %1051
  %v1053 = vadd.f32 %v1005, %v1022
  %v1054 = vadd.f32 %v1006, %v1024
  %v1055 = vadd.f32 %v1007, %v1026
  %v1056 = vadd.f32 %v1008, %v1028
  %v1057 = vadd.f32 %v1009, %v1030
  %v1058 = vadd.f32 %v1010, %v1032
  %v1059 = vadd.f32 %v1011, %v1034
  %v1060 = vadd.f32 %v1012, %v1036
  %v1061 = vadd.f32 %v1013, %v1038
  %v1062 = vadd.f32 %v1014, %v1040
  %v1063 = vadd.f32 %v1015, %v1042
  %v1064 = vadd.f32 %v1016, %v1044
  %v1065 = vadd.f32 %v1017, %v1046
  %v1066 = vadd.f32 %v1018, %v1048
  %v1067 = vadd.f32 %v1019, %v1050
  %v1068 = vadd.f32 %v1020, %v1052
  %1069 = vst.msk [vmem:[#allocation5] sm:$0xff] %vm876, %v1053
  %1070 = vst.msk [vmem:[#allocation5 + $0x8] sm:$0xff] %vm876, %v1054
  %1071 = vst.msk [vmem:[#allocation5 + $0x10] sm:$0xff] %vm876, %v1055
  %1072 = vst.msk [vmem:[#allocation5 + $0x18] sm:$0xff] %vm876, %v1056
  %1073 = vst.msk [vmem:[#allocation5 + $0x20] sm:$0xff] %vm876, %v1057
  %1074 = vst.msk [vmem:[#allocation5 + $0x28] sm:$0xff] %vm876, %v1058
  %1075 = vst.msk [vmem:[#allocation5 + $0x30] sm:$0xff] %vm876, %v1059
  %1076 = vst.msk [vmem:[#allocation5 + $0x38] sm:$0xff] %vm876, %v1060
  %1077 = vst.msk [vmem:[#allocation5 + $0x40] sm:$0xff] %vm876, %v1061
  %1078 = vst.msk [vmem:[#allocation5 + $0x48] sm:$0xff] %vm876, %v1062
  %1079 = vst.msk [vmem:[#allocation5 + $0x50] sm:$0xff] %vm876, %v1063
  %1080 = vst.msk [vmem:[#allocation5 + $0x58] sm:$0xff] %vm876, %v1064
  %1081 = vst.msk [vmem:[#allocation5 + $0x60] sm:$0xff] %vm876, %v1065
  %1082 = vst.msk [vmem:[#allocation5 + $0x68] sm:$0xff] %vm876, %v1066
  %1083 = vst.msk [vmem:[#allocation5 + $0x70] sm:$0xff] %vm876, %v1067
  %1084 = vst.msk [vmem:[#allocation5 + $0x78] sm:$0xff] %vm876, %v1068
  // Predicated region
  $region22: #{tpu_custom_call.1} parent=0 // pred_check
    %p1085 = pneg %p18
  $region23: #{tpu_custom_call.1} parent=0 // pred_check_branch
    %1087 = sbr.rel (%p1085) target = $region25
  $region24: #{tpu_custom_call.1} parent=0 // pred_region
    %v1088 = vld [vmem:[#allocation2] sm:$0xff]
    %v1089 = vld [vmem:[#allocation2 + $0x8] sm:$0xff]
    %v1090 = vld [vmem:[#allocation2 + $0x10] sm:$0xff]
    %v1091 = vld [vmem:[#allocation2 + $0x18] sm:$0xff]
    %v1092 = vld [vmem:[#allocation2 + $0x20] sm:$0xff]
    %v1093 = vld [vmem:[#allocation2 + $0x28] sm:$0xff]
    %v1094 = vld [vmem:[#allocation2 + $0x30] sm:$0xff]
    %v1095 = vld [vmem:[#allocation2 + $0x38] sm:$0xff]
    %v1096 = vld [vmem:[#allocation2 + $0x40] sm:$0xff]
    %v1097 = vld [vmem:[#allocation2 + $0x48] sm:$0xff]
    %v1098 = vld [vmem:[#allocation2 + $0x50] sm:$0xff]
    %v1099 = vld [vmem:[#allocation2 + $0x58] sm:$0xff]
    %v1100 = vld [vmem:[#allocation2 + $0x60] sm:$0xff]
    %v1101 = vld [vmem:[#allocation2 + $0x68] sm:$0xff]
    %v1102 = vld [vmem:[#allocation2 + $0x70] sm:$0xff]
    %v1103 = vld [vmem:[#allocation2 + $0x78] sm:$0xff]
    %v1104 = vld [vmem:[#allocation3] sm:$0xff]
    %v1105 = vld [vmem:[#allocation3 + $0x8] sm:$0xff]
    %v1106 = vld [vmem:[#allocation3 + $0x10] sm:$0xff]
    %v1107 = vld [vmem:[#allocation3 + $0x18] sm:$0xff]
    %v1108 = vld [vmem:[#allocation3 + $0x20] sm:$0xff]
    %v1109 = vld [vmem:[#allocation3 + $0x28] sm:$0xff]
    %v1110 = vld [vmem:[#allocation3 + $0x30] sm:$0xff]
    %v1111 = vld [vmem:[#allocation3 + $0x38] sm:$0xff]
    %v1112 = vld [vmem:[#allocation3 + $0x40] sm:$0xff]
    %v1113 = vld [vmem:[#allocation3 + $0x48] sm:$0xff]
    %v1114 = vld [vmem:[#allocation3 + $0x50] sm:$0xff]
    %v1115 = vld [vmem:[#allocation3 + $0x58] sm:$0xff]
    %v1116 = vld [vmem:[#allocation3 + $0x60] sm:$0xff]
    %v1117 = vld [vmem:[#allocation3 + $0x68] sm:$0xff]
    %v1118 = vld [vmem:[#allocation3 + $0x70] sm:$0xff]
    %v1119 = vld [vmem:[#allocation3 + $0x78] sm:$0xff]
    %v1120 = vlog2.pop %v1104
    %v1121 = vmul.f32 %v1120, 0.6931472
    %v1122 = vlog2.pop %v1105
    %v1123 = vmul.f32 %v1122, 0.6931472
    %v1124 = vlog2.pop %v1106
    %v1125 = vmul.f32 %v1124, 0.6931472
    %v1126 = vlog2.pop %v1107
    %v1127 = vmul.f32 %v1126, 0.6931472
    %v1128 = vlog2.pop %v1108
    %v1129 = vmul.f32 %v1128, 0.6931472
    %v1130 = vlog2.pop %v1109
    %v1131 = vmul.f32 %v1130, 0.6931472
    %v1132 = vlog2.pop %v1110
    %v1133 = vmul.f32 %v1132, 0.6931472
    %v1134 = vlog2.pop %v1111
    %v1135 = vmul.f32 %v1134, 0.6931472
    %v1136 = vlog2.pop %v1112
    %v1137 = vmul.f32 %v1136, 0.6931472
    %v1138 = vlog2.pop %v1113
    %v1139 = vmul.f32 %v1138, 0.6931472
    %v1140 = vlog2.pop %v1114
    %v1141 = vmul.f32 %v1140, 0.6931472
    %v1142 = vlog2.pop %v1115
    %v1143 = vmul.f32 %v1142, 0.6931472
    %v1144 = vlog2.pop %v1116
    %v1145 = vmul.f32 %v1144, 0.6931472
    %v1146 = vlog2.pop %v1117
    %v1147 = vmul.f32 %v1146, 0.6931472
    %v1148 = vlog2.pop %v1118
    %v1149 = vmul.f32 %v1148, 0.6931472
    %v1150 = vlog2.pop %v1119
    %v1151 = vmul.f32 %v1150, 0.6931472
    %v1152 = vadd.f32 %v1088, %v1121
    %v1153 = vadd.f32 %v1089, %v1123
    %v1154 = vadd.f32 %v1090, %v1125
    %v1155 = vadd.f32 %v1091, %v1127
    %v1156 = vadd.f32 %v1092, %v1129
    %v1157 = vadd.f32 %v1093, %v1131
    %v1158 = vadd.f32 %v1094, %v1133
    %v1159 = vadd.f32 %v1095, %v1135
    %v1160 = vadd.f32 %v1096, %v1137
    %v1161 = vadd.f32 %v1097, %v1139
    %v1162 = vadd.f32 %v1098, %v1141
    %v1163 = vadd.f32 %v1099, %v1143
    %v1164 = vadd.f32 %v1100, %v1145
    %v1165 = vadd.f32 %v1101, %v1147
    %v1166 = vadd.f32 %v1102, %v1149
    %v1167 = vadd.f32 %v1103, %v1151
    %v1168 = vld [vmem:[#allocation5] sm:$0xff]
    %v1169 = vld [vmem:[#allocation5 + $0x8] sm:$0xff]
    %v1170 = vld [vmem:[#allocation5 + $0x10] sm:$0xff]
    %v1171 = vld [vmem:[#allocation5 + $0x18] sm:$0xff]
    %v1172 = vld [vmem:[#allocation5 + $0x20] sm:$0xff]
    %v1173 = vld [vmem:[#allocation5 + $0x28] sm:$0xff]
    %v1174 = vld [vmem:[#allocation5 + $0x30] sm:$0xff]
    %v1175 = vld [vmem:[#allocation5 + $0x38] sm:$0xff]
    %v1176 = vld [vmem:[#allocation5 + $0x40] sm:$0xff]
    %v1177 = vld [vmem:[#allocation5 + $0x48] sm:$0xff]
    %v1178 = vld [vmem:[#allocation5 + $0x50] sm:$0xff]
    %v1179 = vld [vmem:[#allocation5 + $0x58] sm:$0xff]
    %v1180 = vld [vmem:[#allocation5 + $0x60] sm:$0xff]
    %v1181 = vld [vmem:[#allocation5 + $0x68] sm:$0xff]
    %v1182 = vld [vmem:[#allocation5 + $0x70] sm:$0xff]
    %v1183 = vld [vmem:[#allocation5 + $0x78] sm:$0xff]
    %v1184 = vld [vmem:[#allocation4] sm:$0xff]
    %v1185 = vld [vmem:[#allocation4 + $0x8] sm:$0xff]
    %v1186 = vld [vmem:[#allocation4 + $0x10] sm:$0xff]
    %v1187 = vld [vmem:[#allocation4 + $0x18] sm:$0xff]
    %v1188 = vld [vmem:[#allocation4 + $0x20] sm:$0xff]
    %v1189 = vld [vmem:[#allocation4 + $0x28] sm:$0xff]
    %v1190 = vld [vmem:[#allocation4 + $0x30] sm:$0xff]
    %v1191 = vld [vmem:[#allocation4 + $0x38] sm:$0xff]
    %v1192 = vld [vmem:[#allocation4 + $0x40] sm:$0xff]
    %v1193 = vld [vmem:[#allocation4 + $0x48] sm:$0xff]
    %v1194 = vld [vmem:[#allocation4 + $0x50] sm:$0xff]
    %v1195 = vld [vmem:[#allocation4 + $0x58] sm:$0xff]
    %v1196 = vld [vmem:[#allocation4 + $0x60] sm:$0xff]
    %v1197 = vld [vmem:[#allocation4 + $0x68] sm:$0xff]
    %v1198 = vld [vmem:[#allocation4 + $0x70] sm:$0xff]
    %v1199 = vld [vmem:[#allocation4 + $0x78] sm:$0xff]
    %v1200 = vmax.f32 %v1168, 1.0
    %v1201 = vmax.f32 %v1169, 1.0
    %v1202 = vmax.f32 %v1170, 1.0
    %v1203 = vmax.f32 %v1171, 1.0
    %v1204 = vmax.f32 %v1172, 1.0
    %v1205 = vmax.f32 %v1173, 1.0
    %v1206 = vmax.f32 %v1174, 1.0
    %v1207 = vmax.f32 %v1175, 1.0
    %v1208 = vmax.f32 %v1176, 1.0
    %v1209 = vmax.f32 %v1177, 1.0
    %v1210 = vmax.f32 %v1178, 1.0
    %v1211 = vmax.f32 %v1179, 1.0
    %v1212 = vmax.f32 %v1180, 1.0
    %v1213 = vmax.f32 %v1181, 1.0
    %v1214 = vmax.f32 %v1182, 1.0
    %v1215 = vmax.f32 %v1183, 1.0
    %v1216 = vrcp.pop %v1200
    %v1217 = vmul.f32 %v1184, %v1216
    %v1218 = vrcp.pop %v1201
    %v1219 = vmul.f32 %v1185, %v1218
    %v1220 = vrcp.pop %v1202
    %v1221 = vmul.f32 %v1186, %v1220
    %v1222 = vrcp.pop %v1203
    %v1223 = vmul.f32 %v1187, %v1222
    %v1224 = vrcp.pop %v1204
    %v1225 = vmul.f32 %v1188, %v1224
    %v1226 = vrcp.pop %v1205
    %v1227 = vmul.f32 %v1189, %v1226
    %v1228 = vrcp.pop %v1206
    %v1229 = vmul.f32 %v1190, %v1228
    %v1230 = vrcp.pop %v1207
    %v1231 = vmul.f32 %v1191, %v1230
    %v1232 = vrcp.pop %v1208
    %v1233 = vmul.f32 %v1192, %v1232
    %v1234 = vrcp.pop %v1209
    %v1235 = vmul.f32 %v1193, %v1234
    %v1236 = vrcp.pop %v1210
    %v1237 = vmul.f32 %v1194, %v1236
    %v1238 = vrcp.pop %v1211
    %v1239 = vmul.f32 %v1195, %v1238
    %v1240 = vrcp.pop %v1212
    %v1241 = vmul.f32 %v1196, %v1240
    %v1242 = vrcp.pop %v1213
    %v1243 = vmul.f32 %v1197, %v1242
    %v1244 = vrcp.pop %v1214
    %v1245 = vmul.f32 %v1198, %v1244
    %v1246 = vrcp.pop %v1215
    %v1247 = vmul.f32 %v1199, %v1246
    %v1248 = vsub.f32 %v1217, %v1152
    %v1249 = vsub.f32 %v1219, %v1153
    %v1250 = vsub.f32 %v1221, %v1154
    %v1251 = vsub.f32 %v1223, %v1155
    %v1252 = vsub.f32 %v1225, %v1156
    %v1253 = vsub.f32 %v1227, %v1157
    %v1254 = vsub.f32 %v1229, %v1158
    %v1255 = vsub.f32 %v1231, %v1159
    %v1256 = vsub.f32 %v1233, %v1160
    %v1257 = vsub.f32 %v1235, %v1161
    %v1258 = vsub.f32 %v1237, %v1162
    %v1259 = vsub.f32 %v1239, %v1163
    %v1260 = vsub.f32 %v1241, %v1164
    %v1261 = vsub.f32 %v1243, %v1165
    %v1262 = vsub.f32 %v1245, %v1166
    %v1263 = vsub.f32 %v1247, %v1167
    %vm1264 = vcmp.lt.s32.totalorder %v347, 16
    %vm1265 = vcmp.lt.s32.totalorder %v348, 16
    %vm1266 = vcmp.lt.s32.totalorder %v349, 16
    %vm1267 = vcmp.lt.s32.totalorder %v350, 16
    %vm1268 = vcmp.lt.s32.totalorder %v351, 16
    %vm1269 = vcmp.lt.s32.totalorder %v352, 16
    %vm1270 = vcmp.lt.s32.totalorder %v353, 16
    %vm1271 = vcmp.lt.s32.totalorder %v354, 16
    %vm1272 = vcmp.lt.s32.totalorder %v355, 16
    %vm1273 = vcmp.lt.s32.totalorder %v356, 16
    %vm1274 = vcmp.lt.s32.totalorder %v357, 16
    %vm1275 = vcmp.lt.s32.totalorder %v358, 16
    %vm1276 = vcmp.lt.s32.totalorder %v359, 16
    %vm1277 = vcmp.lt.s32.totalorder %v360, 16
    %vm1278 = vcmp.lt.s32.totalorder %v361, 16
    %vm1279 = vcmp.lt.s32.totalorder %v362, 16
    %vm1280 = vcmp.gt.f32.partialorder %v1168, 0.0
    %vm1281 = vcmp.gt.f32.partialorder %v1169, 0.0
    %vm1282 = vcmp.gt.f32.partialorder %v1170, 0.0
    %vm1283 = vcmp.gt.f32.partialorder %v1171, 0.0
    %vm1284 = vcmp.gt.f32.partialorder %v1172, 0.0
    %vm1285 = vcmp.gt.f32.partialorder %v1173, 0.0
    %vm1286 = vcmp.gt.f32.partialorder %v1174, 0.0
    %vm1287 = vcmp.gt.f32.partialorder %v1175, 0.0
    %vm1288 = vcmp.gt.f32.partialorder %v1176, 0.0
    %vm1289 = vcmp.gt.f32.partialorder %v1177, 0.0
    %vm1290 = vcmp.gt.f32.partialorder %v1178, 0.0
    %vm1291 = vcmp.gt.f32.partialorder %v1179, 0.0
    %vm1292 = vcmp.gt.f32.partialorder %v1180, 0.0
    %vm1293 = vcmp.gt.f32.partialorder %v1181, 0.0
    %vm1294 = vcmp.gt.f32.partialorder %v1182, 0.0
    %vm1295 = vcmp.gt.f32.partialorder %v1183, 0.0
    %vm1296 = vmand %vm1264, %vm1280
    %vm1297 = vmand %vm1265, %vm1281
    %vm1298 = vmand %vm1266, %vm1282
    %vm1299 = vmand %vm1267, %vm1283
    %vm1300 = vmand %vm1268, %vm1284
    %vm1301 = vmand %vm1269, %vm1285
    %vm1302 = vmand %vm1270, %vm1286
    %vm1303 = vmand %vm1271, %vm1287
    %vm1304 = vmand %vm1272, %vm1288
    %vm1305 = vmand %vm1273, %vm1289
    %vm1306 = vmand %vm1274, %vm1290
    %vm1307 = vmand %vm1275, %vm1291
    %vm1308 = vmand %vm1276, %vm1292
    %vm1309 = vmand %vm1277, %vm1293
    %vm1310 = vmand %vm1278, %vm1294
    %vm1311 = vmand %vm1279, %vm1295
    %v1312 = vmul.f32 %v1248, -1.0
    %v1313 = vmul.f32 %v1249, -1.0
    %v1314 = vmul.f32 %v1250, -1.0
    %v1315 = vmul.f32 %v1251, -1.0
    %v1316 = vmul.f32 %v1252, -1.0
    %v1317 = vmul.f32 %v1253, -1.0
    %v1318 = vmul.f32 %v1254, -1.0
    %v1319 = vmul.f32 %v1255, -1.0
    %v1320 = vmul.f32 %v1256, -1.0
    %v1321 = vmul.f32 %v1257, -1.0
    %v1322 = vmul.f32 %v1258, -1.0
    %v1323 = vmul.f32 %v1259, -1.0
    %v1324 = vmul.f32 %v1260, -1.0
    %v1325 = vmul.f32 %v1261, -1.0
    %v1326 = vmul.f32 %v1262, -1.0
    %v1327 = vmul.f32 %v1263, -1.0
    %v1328 = vsel %vm1296, %v1312, 0.0
    %v1329 = vsel %vm1297, %v1313, 0.0
    %v1330 = vsel %vm1298, %v1314, 0.0
    %v1331 = vsel %vm1299, %v1315, 0.0
    %v1332 = vsel %vm1300, %v1316, 0.0
    %v1333 = vsel %vm1301, %v1317, 0.0
    %v1334 = vsel %vm1302, %v1318, 0.0
    %v1335 = vsel %vm1303, %v1319, 0.0
    %v1336 = vsel %vm1304, %v1320, 0.0
    %v1337 = vsel %vm1305, %v1321, 0.0
    %v1338 = vsel %vm1306, %v1322, 0.0
    %v1339 = vsel %vm1307, %v1323, 0.0
    %v1340 = vsel %vm1308, %v1324, 0.0
    %v1341 = vsel %vm1309, %v1325, 0.0
    %v1342 = vsel %vm1310, %v1326, 0.0
    %v1343 = vsel %vm1311, %v1327, 0.0
    %1344 = vst.msk [vmem:[%s4] sm:$0xff] %vm876, %v1328
    %1345 = vst.msk [vmem:[%s4 + $0x8] sm:$0xff] %vm876, %v1329
    %1346 = vst.msk [vmem:[%s4 + $0x10] sm:$0xff] %vm876, %v1330
    %1347 = vst.msk [vmem:[%s4 + $0x18] sm:$0xff] %vm876, %v1331
    %1348 = vst.msk [vmem:[%s4 + $0x20] sm:$0xff] %vm876, %v1332
    %1349 = vst.msk [vmem:[%s4 + $0x28] sm:$0xff] %vm876, %v1333
    %1350 = vst.msk [vmem:[%s4 + $0x30] sm:$0xff] %vm876, %v1334
    %1351 = vst.msk [vmem:[%s4 + $0x38] sm:$0xff] %vm876, %v1335
    %1352 = vst.msk [vmem:[%s4 + $0x40] sm:$0xff] %vm876, %v1336
    %1353 = vst.msk [vmem:[%s4 + $0x48] sm:$0xff] %vm876, %v1337
    %1354 = vst.msk [vmem:[%s4 + $0x50] sm:$0xff] %vm876, %v1338
    %1355 = vst.msk [vmem:[%s4 + $0x58] sm:$0xff] %vm876, %v1339
    %1356 = vst.msk [vmem:[%s4 + $0x60] sm:$0xff] %vm876, %v1340
    %1357 = vst.msk [vmem:[%s4 + $0x68] sm:$0xff] %vm876, %v1341
    %1358 = vst.msk [vmem:[%s4 + $0x70] sm:$0xff] %vm876, %v1342
    %1359 = vst.msk [vmem:[%s4 + $0x78] sm:$0xff] %vm876, %v1343
  $region25: #{tpu_custom_call.1} parent=0 // pred_fallthru
    _
  // Predicated region
  $region26: #{tpu_custom_call.1} parent=0 // pred_check
    _
  $region27: #{tpu_custom_call.1} parent=0 // pred_check_branch
    %1361 = sbr.rel (0) target = $region29
  $region28: #{tpu_custom_call.1} parent=0 // pred_region
    _
  $region29: #{tpu_custom_call.1} parent=0 // pred_fallthru
    _
  // Predicated region
  $region30: #{tpu_custom_call.1} parent=0 // pred_check
    _
  $region31: #{tpu_custom_call.1} parent=0 // pred_check_branch
    %1363 = sbr.rel (0) target = $region33
  $region32: #{tpu_custom_call.1} parent=0 // pred_region
    _
  $region33: #{tpu_custom_call.1} parent=0 // pred_fallthru
    _

</llo_original>
